<compile_context>
chip_gen: v7x
topology: tpu7x:2x2x1
jax: 0.10.0
libtpu: 0.0.40
codegen_flags: <defaults>
</compile_context>

<pallas_src>
import jax
import jax.numpy as jnp
from jax import lax
from jax.experimental import pallas as pl
from jax.experimental.pallas import tpu as pltpu

EPS = 1e-5      # PyTorch BatchNorm1d default eps
FEAT = 512      # flattened feature dim
LANE = 128      # TPU lane width


def _round_up(a, b):
    return (a + b - 1) // b * b


def _cdiv(a, b):
    return (a + b - 1) // b


def _pick_tm(n):
    """Batch-tile size: sublane-aligned, >=2 tiles when possible (v7x megacore),
    capped at 512 rows (comfortably inside 32 MiB scoped VMEM on every gen)."""
    if n <= 8:
        return _round_up(max(n, 1), 8)
    if n <= 1024:
        return _round_up(_cdiv(n, 2), 8)
    return 512


# ---------------------------------------------------------------------------
# Stage 1: folded-BN1 + Linear(512,512)  -> h1 (n,512) f32
#          + per-tile BN2 partial stats (masked sum / sum-of-squares of h1 rows)
# ---------------------------------------------------------------------------
def _make_stage1_kernel(tm, n):
    ragged = (n % tm) != 0

    def kernel(x_ref, s1_ref, t1_ref, w1_ref, b1_ref, h1_ref, st_ref):
        # x: (tm, 512) f32 ; s1/t1/b1: (1, 512) f32 ; w1: (512, 512) bf16
        xn = x_ref[...] * s1_ref[...] + t1_ref[...]              # folded BN1 (f32 VPU)
        h1 = jnp.dot(xn.astype(jnp.bfloat16), w1_ref[...],
                     preferred_element_type=jnp.float32) + b1_ref[...]
        h1_ref[...] = h1

        # BN2 partial statistics over the REAL rows of this tile only.
        if ragged:
            row = (pl.program_id(0) * tm
                   + lax.broadcasted_iota(jnp.int32, (tm, 1), 0))
            hv = jnp.where(row < n, h1, 0.0)       # select: garbage/NaN rows -> 0
        else:
            hv = h1
        # st block: (1, 8, 512); row 0 = sum, row 1 = sum of squares (rows 2..7 unused)
        st_ref[0:1, 0:1, :] = jnp.sum(hv, axis=0, keepdims=True)[None]
        st_ref[0:1, 1:2, :] = jnp.sum(hv * hv, axis=0, keepdims=True)[None]

    return kernel


# ---------------------------------------------------------------------------
# Stage 2: folded-BN2 + ReLU + Linear(512,100p) + ReLU + Linear(100p,9p)
#          -> out (n, 128) f32 (lane padded; real logits in [:, :9])
# ---------------------------------------------------------------------------
def _stage2_kernel(h1_ref, s2_ref, t2_ref, w2_ref, b2_ref, w3_ref, b3_ref,
                   out_ref):
    h = jnp.maximum(h1_ref[...] * s2_ref[...] + t2_ref[...], 0.0)   # BN2 + ReLU
    h = jnp.maximum(
        jnp.dot(h.astype(jnp.bfloat16), w2_ref[...],
                preferred_element_type=jnp.float32) + b2_ref[...], 0.0)
    out_ref[...] = jnp.dot(h.astype(jnp.bfloat16), w3_ref[...],
                           preferred_element_type=jnp.float32) + b3_ref[...]


def imi_forward(x_nchw, params):
    """x_nchw: (N, C, H, W) with C*H*W == 512. Returns (N, 9) float32."""
    (g1, be1, w1, b1, g2, be2, w2, b2, w3, b3) = params

    n = x_nchw.shape[0]
    x2d = x_nchw.reshape(n, -1).astype(jnp.float32)       # torch.nn.Flatten
    assert x2d.shape[1] == FEAT, "flattened feature dim must be 512"

    tm = _pick_tm(n)
    num_tiles = _cdiv(n, tm)        # ragged last tile handled by Pallas (no pad copy)
    grid = (num_tiles,)

    cparams = pltpu.CompilerParams(
        dimension_semantics=("parallel",),       # batch tiles are independent
        vmem_limit_bytes=32 * 1024 * 1024)

    # Revisited (constant-index) blocks: single pipeline buffer is enough.
    resident = dict(pipeline_mode=pl.Buffered(1))

    # ---- BN1 (training-mode batch stats), single-pass sum / sum-of-squares ----
    inv_n = jnp.float32(1.0 / n)
    sum1 = jnp.sum(x2d, axis=0, keepdims=True)
    sq1 = jnp.sum(x2d * x2d, axis=0, keepdims=True)
    mu1 = sum1 * inv_n
    var1 = jnp.maximum(sq1 * inv_n - mu1 * mu1, 0.0)      # biased variance
    s1 = g1 * lax.rsqrt(var1 + EPS)
    t1 = be1 - mu1 * s1

    w1_bf = w1.astype(jnp.bfloat16)

    h1, stats = pl.pallas_call(
        _make_stage1_kernel(tm, n),
        out_shape=(jax.ShapeDtypeStruct((n, FEAT), jnp.float32),
                   jax.ShapeDtypeStruct((num_tiles, 8, FEAT), jnp.float32)),
        grid=grid,
        in_specs=[
            pl.BlockSpec((tm, FEAT), lambda i: (i, 0)),                 # x tile
            pl.BlockSpec((1, FEAT), lambda i: (0, 0), **resident),      # s1
            pl.BlockSpec((1, FEAT), lambda i: (0, 0), **resident),      # t1
            pl.BlockSpec((FEAT, FEAT), lambda i: (0, 0), **resident),   # w1 (bf16)
            pl.BlockSpec((1, FEAT), lambda i: (0, 0), **resident),      # b1
        ],
        out_specs=(pl.BlockSpec((tm, FEAT), lambda i: (i, 0)),          # h1 tile
                   pl.BlockSpec((1, 8, FEAT), lambda i: (i, 0, 0))),    # BN2 partials
        compiler_params=cparams,
    )(x2d, s1, t1, w1_bf, b1)

    # ---- BN2 stats from the fused per-tile partials (no extra HBM pass on h1) ----
    psum = jnp.sum(stats[:, 0, :], axis=0, keepdims=True)
    psq = jnp.sum(stats[:, 1, :], axis=0, keepdims=True)
    mu2 = psum * inv_n
    var2 = jnp.maximum(psq * inv_n - mu2 * mu2, 0.0)
    s2 = g2 * lax.rsqrt(var2 + EPS)
    t2 = be2 - mu2 * s2

    # ---- zero-pad narrow dims to lane width (exact: ReLU(0)=0, zero rows/cols) ----
    w2p = jnp.zeros((FEAT, LANE), jnp.bfloat16).at[:, :w2.shape[1]].set(
        w2.astype(jnp.bfloat16))
    b2p = jnp.zeros((1, LANE), jnp.float32).at[:, :b2.shape[1]].set(b2)
    w3p = jnp.zeros((LANE, LANE), jnp.bfloat16).at[:w3.shape[0], :w3.shape[1]].set(
        w3.astype(jnp.bfloat16))
    b3p = jnp.zeros((1, LANE), jnp.float32).at[:, :b3.shape[1]].set(b3)

    out_pad = pl.pallas_call(
        _stage2_kernel,
        out_shape=jax.ShapeDtypeStruct((n, LANE), jnp.float32),
        grid=grid,
        in_specs=[
            pl.BlockSpec((tm, FEAT), lambda i: (i, 0)),                 # h1 tile
            pl.BlockSpec((1, FEAT), lambda i: (0, 0), **resident),      # s2
            pl.BlockSpec((1, FEAT), lambda i: (0, 0), **resident),      # t2
            pl.BlockSpec((FEAT, LANE), lambda i: (0, 0), **resident),   # w2 padded
            pl.BlockSpec((1, LANE), lambda i: (0, 0), **resident),      # b2 padded
            pl.BlockSpec((LANE, LANE), lambda i: (0, 0), **resident),   # w3 padded
            pl.BlockSpec((1, LANE), lambda i: (0, 0), **resident),      # b3 padded
        ],
        out_specs=pl.BlockSpec((tm, LANE), lambda i: (i, 0)),
        compiler_params=cparams,
    )(h1, s2, t2, w2p, b2p, w3p, b3p)

    return out_pad[:, :9]


def init_params(key):
    """Deterministic synthetic parameters matching the PyTorch module shapes."""
    ks = jax.random.split(key, 6)

    def linear(k, fan_in, fan_out):
        kw, kb = jax.random.split(k)
        bound = 1.0 / jnp.sqrt(fan_in)
        # PyTorch Linear stores W as (out, in); we pre-transpose to (in, out).
        w_t = jax.random.uniform(kw, (fan_in, fan_out), jnp.float32, -bound, bound)
        b = jax.random.uniform(kb, (1, fan_out), jnp.float32, -bound, bound)
        return w_t, b

    # BatchNorm affine params (PyTorch init: gamma=1, beta=0) — perturbed
    # deterministically so they actually participate in the compute.
    g1 = 1.0 + 0.01 * jax.random.normal(ks[0], (1, FEAT), jnp.float32)
    be1 = 0.01 * jax.random.normal(ks[1], (1, FEAT), jnp.float32)
    g2 = 1.0 + 0.01 * jax.random.normal(ks[2], (1, FEAT), jnp.float32)
    be2 = 0.01 * jax.random.normal(ks[3], (1, FEAT), jnp.float32)

    w1, b1 = linear(ks[4], FEAT, FEAT)
    k5a, k5b = jax.random.split(ks[5])
    w2, b2 = linear(k5a, FEAT, 100)
    w3, b3 = linear(k5b, 100, 9)

    return (g1, be1, w1, b1, g2, be2, w2, b2, w3, b3)


def reference_forward(x_nchw, params):
    """Pure-JAX reference with the same bf16-matmul / f32-accumulate numerics."""
    (g1, be1, w1, b1, g2, be2, w2, b2, w3, b3) = params
    x = x_nchw.reshape(x_nchw.shape[0], -1).astype(jnp.float32)

    mu1 = x.mean(0, keepdims=True)
    v1 = ((x - mu1) ** 2).mean(0, keepdims=True)
    s1 = g1 * lax.rsqrt(v1 + EPS)
    h = x * s1 + (be1 - mu1 * s1)
    h = jnp.dot(h.astype(jnp.bfloat16), w1.astype(jnp.bfloat16),
                preferred_element_type=jnp.float32) + b1

    mu2 = h.mean(0, keepdims=True)
    v2 = ((h - mu2) ** 2).mean(0, keepdims=True)
    s2 = g2 * lax.rsqrt(v2 + EPS)
    h = jnp.maximum(h * s2 + (be2 - mu2 * s2), 0.0)

    h = jnp.maximum(jnp.dot(h.astype(jnp.bfloat16), w2.astype(jnp.bfloat16),
                            preferred_element_type=jnp.float32) + b2, 0.0)
    return jnp.dot(h.astype(jnp.bfloat16), w3.astype(jnp.bfloat16),
                   preferred_element_type=jnp.float32) + b3


if __name__ == "__main__":
    key = jax.random.PRNGKey(0)
    kx, kp = jax.random.split(key)

    # Small, forward-consistent input: N=8, C=2, H=16, W=16 -> 2*16*16 = 512 features.
    x = jax.random.normal(kx, (8, 2, 16, 16), dtype=jnp.float32)
    params = init_params(kp)

    fwd = jax.jit(imi_forward)
    out = jax.block_until_ready(fwd(x, params))

    ref = reference_forward(x, params)
    assert out.shape == (8, 9)
    assert jnp.allclose(out, ref, atol=5e-3, rtol=5e-3)

    print("KERNEL_OK")
</pallas_src>

<mosaic_0001>
module attributes {stable_mosaic.version = 11 : i64} {
  func.func @kernel(%arg0: i32, %arg1: memref<8x512xf32, #tpu.memory_space<vmem>>, %arg2: memref<1x512xf32, #tpu.memory_space<vmem>>, %arg3: memref<1x512xf32, #tpu.memory_space<vmem>>, %arg4: memref<512x512xbf16, #tpu.memory_space<vmem>>, %arg5: memref<1x512xf32, #tpu.memory_space<vmem>>, %arg6: memref<8x512xf32, #tpu.memory_space<vmem>>, %arg7: memref<1x8x512xf32, #tpu.memory_space<vmem>>) attributes {dimension_semantics = [#tpu.dimension_semantics<parallel>], iteration_bounds = array<i64: 1>, scalar_prefetch = 0 : i64, scratch_operands = 0 : i64, tpu.core_type = #tpu.core_type<tc>, window_params = [{transform_indices = @transform_0, window_bounds = array<i64: 8, 512>}, {pipeline_mode = #tpu.pipeline_mode<synchronous>, transform_indices = @transform_1, window_bounds = array<i64: 1, 512>}, {pipeline_mode = #tpu.pipeline_mode<synchronous>, transform_indices = @transform_2, window_bounds = array<i64: 1, 512>}, {pipeline_mode = #tpu.pipeline_mode<synchronous>, transform_indices = @transform_3, window_bounds = array<i64: 512, 512>}, {pipeline_mode = #tpu.pipeline_mode<synchronous>, transform_indices = @transform_4, window_bounds = array<i64: 1, 512>}, {transform_indices = @transform_5, window_bounds = array<i64: 8, 512>}, {transform_indices = @transform_6, window_bounds = array<i64: 1, 8, 512>}]} {
    %c0 = arith.constant 0 : index
    %c0_0 = arith.constant 0 : index
    %0 = vector.load %arg1[%c0, %c0_0] : memref<8x512xf32, #tpu.memory_space<vmem>>, vector<8x512xf32>
    %c0_1 = arith.constant 0 : index
    %c0_2 = arith.constant 0 : index
    %1 = vector.load %arg2[%c0_1, %c0_2] : memref<1x512xf32, #tpu.memory_space<vmem>>, vector<1x512xf32>
    %2 = vector.broadcast %1 : vector<1x512xf32> to vector<8x512xf32>
    %3 = arith.mulf %0, %2 : vector<8x512xf32>
    %c0_3 = arith.constant 0 : index
    %c0_4 = arith.constant 0 : index
    %4 = vector.load %arg3[%c0_3, %c0_4] : memref<1x512xf32, #tpu.memory_space<vmem>>, vector<1x512xf32>
    %5 = vector.broadcast %4 : vector<1x512xf32> to vector<8x512xf32>
    %6 = arith.addf %3, %5 : vector<8x512xf32>
    %7 = arith.truncf %6 : vector<8x512xf32> to vector<8x512xbf16>
    %c0_5 = arith.constant 0 : index
    %c0_6 = arith.constant 0 : index
    %8 = vector.load %arg4[%c0_5, %c0_6] : memref<512x512xbf16, #tpu.memory_space<vmem>>, vector<512x512xbf16>
    %cst = arith.constant dense<0.000000e+00> : vector<8x512xf32>
    %9 = tpu.matmul %7, %8, %cst {dimension_numbers = #tpu.dot_dimension_numbers<[1], [0], [0], [1], [0, 0, 1, 1], [], []>} : vector<8x512xbf16>, vector<512x512xbf16>, vector<8x512xf32> -> vector<8x512xf32>
    %c0_7 = arith.constant 0 : index
    %c0_8 = arith.constant 0 : index
    %10 = vector.load %arg5[%c0_7, %c0_8] : memref<1x512xf32, #tpu.memory_space<vmem>>, vector<1x512xf32>
    %11 = vector.broadcast %10 : vector<1x512xf32> to vector<8x512xf32>
    %12 = arith.addf %9, %11 : vector<8x512xf32>
    %c0_9 = arith.constant 0 : index
    %c0_10 = arith.constant 0 : index
    %13 = vector.load %arg6[%c0_9, %c0_10] : memref<8x512xf32, #tpu.memory_space<vmem>>, vector<8x512xf32>
    tpu.vector_store %arg6[%c0_9, %c0_10], %12 {strides = array<i32>} : memref<8x512xf32, #tpu.memory_space<vmem>>, vector<8x512xf32>,
    %cst_11 = arith.constant dense<0.000000e+00> : vector<512xf32>
    %14 = vector.multi_reduction <add>, %12, %cst_11 [0] : vector<8x512xf32> to vector<512xf32>
    %15 = vector.shape_cast %14 : vector<512xf32> to vector<1x512xf32>
    %16 = vector.shape_cast %15 : vector<1x512xf32> to vector<1x1x512xf32>
    %c0_12 = arith.constant 0 : index
    %c0_13 = arith.constant 0 : index
    %c0_14 = arith.constant 0 : index
    %17 = vector.load %arg7[%c0_12, %c0_13, %c0_14] : memref<1x8x512xf32, #tpu.memory_space<vmem>>, vector<1x1x512xf32>
    tpu.vector_store %arg7[%c0_12, %c0_13, %c0_14], %16 {strides = array<i32>} : memref<1x8x512xf32, #tpu.memory_space<vmem>>, vector<1x1x512xf32>,
    %18 = arith.mulf %12, %12 : vector<8x512xf32>
    %cst_15 = arith.constant dense<0.000000e+00> : vector<512xf32>
    %19 = vector.multi_reduction <add>, %18, %cst_15 [0] : vector<8x512xf32> to vector<512xf32>
    %20 = vector.shape_cast %19 : vector<512xf32> to vector<1x512xf32>
    %21 = vector.shape_cast %20 : vector<1x512xf32> to vector<1x1x512xf32>
    %c0_16 = arith.constant 0 : index
    %c1 = arith.constant 1 : index
    %c0_17 = arith.constant 0 : index
    %22 = vector.load %arg7[%c0_16, %c1, %c0_17] : memref<1x8x512xf32, #tpu.memory_space<vmem>>, vector<1x1x512xf32>
    tpu.vector_store %arg7[%c0_16, %c1, %c0_17], %21 {strides = array<i32>} : memref<1x8x512xf32, #tpu.memory_space<vmem>>, vector<1x1x512xf32>,
    return
  }
  func.func @transform_0(%arg0: i32) -> (i32, i32) {
    %c0_i32 = arith.constant 0 : i32
    %c0_i32_0 = arith.constant 0 : i32
    return %arg0, %c0_i32 : i32, i32
  }
  func.func @transform_1(%arg0: i32) -> (i32, i32) {
    %c0_i32 = arith.constant 0 : i32
    %c0_i32_0 = arith.constant 0 : i32
    %c0_i32_1 = arith.constant 0 : i32
    return %c0_i32, %c0_i32_0 : i32, i32
  }
  func.func @transform_2(%arg0: i32) -> (i32, i32) {
    %c0_i32 = arith.constant 0 : i32
    %c0_i32_0 = arith.constant 0 : i32
    %c0_i32_1 = arith.constant 0 : i32
    return %c0_i32, %c0_i32_0 : i32, i32
  }
  func.func @transform_3(%arg0: i32) -> (i32, i32) {
    %c0_i32 = arith.constant 0 : i32
    %c0_i32_0 = arith.constant 0 : i32
    %c0_i32_1 = arith.constant 0 : i32
    return %c0_i32, %c0_i32_0 : i32, i32
  }
  func.func @transform_4(%arg0: i32) -> (i32, i32) {
    %c0_i32 = arith.constant 0 : i32
    %c0_i32_0 = arith.constant 0 : i32
    %c0_i32_1 = arith.constant 0 : i32
    return %c0_i32, %c0_i32_0 : i32, i32
  }
  func.func @transform_5(%arg0: i32) -> (i32, i32) {
    %c0_i32 = arith.constant 0 : i32
    %c0_i32_0 = arith.constant 0 : i32
    return %arg0, %c0_i32 : i32, i32
  }
  func.func @transform_6(%arg0: i32) -> (i32, i32, i32) {
    %c0_i32 = arith.constant 0 : i32
    %c0_i32_0 = arith.constant 0 : i32
    %c0_i32_1 = arith.constant 0 : i32
    return %arg0, %c0_i32, %c0_i32_0 : i32, i32, i32
  }
}

module attributes {stable_mosaic.version = 11 : i64} {
  func.func @_stage2_kernel(%arg0: i32, %arg1: memref<8x512xf32, #tpu.memory_space<vmem>>, %arg2: memref<1x512xf32, #tpu.memory_space<vmem>>, %arg3: memref<1x512xf32, #tpu.memory_space<vmem>>, %arg4: memref<512x128xbf16, #tpu.memory_space<vmem>>, %arg5: memref<1x128xf32, #tpu.memory_space<vmem>>, %arg6: memref<128x128xbf16, #tpu.memory_space<vmem>>, %arg7: memref<1x128xf32, #tpu.memory_space<vmem>>, %arg8: memref<8x128xf32, #tpu.memory_space<vmem>>) attributes {dimension_semantics = [#tpu.dimension_semantics<parallel>], iteration_bounds = array<i64: 1>, scalar_prefetch = 0 : i64, scratch_operands = 0 : i64, tpu.core_type = #tpu.core_type<tc>, window_params = [{transform_indices = @transform_0, window_bounds = array<i64: 8, 512>}, {pipeline_mode = #tpu.pipeline_mode<synchronous>, transform_indices = @transform_1, window_bounds = array<i64: 1, 512>}, {pipeline_mode = #tpu.pipeline_mode<synchronous>, transform_indices = @transform_2, window_bounds = array<i64: 1, 512>}, {pipeline_mode = #tpu.pipeline_mode<synchronous>, transform_indices = @transform_3, window_bounds = array<i64: 512, 128>}, {pipeline_mode = #tpu.pipeline_mode<synchronous>, transform_indices = @transform_4, window_bounds = array<i64: 1, 128>}, {pipeline_mode = #tpu.pipeline_mode<synchronous>, transform_indices = @transform_5, window_bounds = array<i64: 128, 128>}, {pipeline_mode = #tpu.pipeline_mode<synchronous>, transform_indices = @transform_6, window_bounds = array<i64: 1, 128>}, {transform_indices = @transform_7, window_bounds = array<i64: 8, 128>}]} {
    %c0 = arith.constant 0 : index
    %c0_0 = arith.constant 0 : index
    %0 = vector.load %arg1[%c0, %c0_0] : memref<8x512xf32, #tpu.memory_space<vmem>>, vector<8x512xf32>
    %c0_1 = arith.constant 0 : index
    %c0_2 = arith.constant 0 : index
    %1 = vector.load %arg2[%c0_1, %c0_2] : memref<1x512xf32, #tpu.memory_space<vmem>>, vector<1x512xf32>
    %2 = vector.broadcast %1 : vector<1x512xf32> to vector<8x512xf32>
    %3 = arith.mulf %0, %2 : vector<8x512xf32>
    %c0_3 = arith.constant 0 : index
    %c0_4 = arith.constant 0 : index
    %4 = vector.load %arg3[%c0_3, %c0_4] : memref<1x512xf32, #tpu.memory_space<vmem>>, vector<1x512xf32>
    %5 = vector.broadcast %4 : vector<1x512xf32> to vector<8x512xf32>
    %6 = arith.addf %3, %5 : vector<8x512xf32>
    %cst = arith.constant 0.000000e+00 : f32
    %7 = vector.broadcast %cst : f32 to vector<8x512xf32>
    %8 = arith.maximumf %6, %7 : vector<8x512xf32>
    %9 = arith.truncf %8 : vector<8x512xf32> to vector<8x512xbf16>
    %c0_5 = arith.constant 0 : index
    %c0_6 = arith.constant 0 : index
    %10 = vector.load %arg4[%c0_5, %c0_6] : memref<512x128xbf16, #tpu.memory_space<vmem>>, vector<512x128xbf16>
    %cst_7 = arith.constant dense<0.000000e+00> : vector<8x128xf32>
    %11 = tpu.matmul %9, %10, %cst_7 {dimension_numbers = #tpu.dot_dimension_numbers<[1], [0], [0], [1], [0, 0, 1, 1], [], []>} : vector<8x512xbf16>, vector<512x128xbf16>, vector<8x128xf32> -> vector<8x128xf32>
    %c0_8 = arith.constant 0 : index
    %c0_9 = arith.constant 0 : index
    %12 = vector.load %arg5[%c0_8, %c0_9] : memref<1x128xf32, #tpu.memory_space<vmem>>, vector<1x128xf32>
    %13 = vector.broadcast %12 : vector<1x128xf32> to vector<8x128xf32>
    %14 = arith.addf %11, %13 : vector<8x128xf32>
    %cst_10 = arith.constant 0.000000e+00 : f32
    %15 = vector.broadcast %cst_10 : f32 to vector<8x128xf32>
    %16 = arith.maximumf %14, %15 : vector<8x128xf32>
    %17 = arith.truncf %16 : vector<8x128xf32> to vector<8x128xbf16>
    %c0_11 = arith.constant 0 : index
    %c0_12 = arith.constant 0 : index
    %18 = vector.load %arg6[%c0_11, %c0_12] : memref<128x128xbf16, #tpu.memory_space<vmem>>, vector<128x128xbf16>
    %cst_13 = arith.constant dense<0.000000e+00> : vector<8x128xf32>
    %19 = tpu.matmul %17, %18, %cst_13 {dimension_numbers = #tpu.dot_dimension_numbers<[1], [0], [0], [1], [0, 0, 1, 1], [], []>} : vector<8x128xbf16>, vector<128x128xbf16>, vector<8x128xf32> -> vector<8x128xf32>
    %c0_14 = arith.constant 0 : index
    %c0_15 = arith.constant 0 : index
    %20 = vector.load %arg7[%c0_14, %c0_15] : memref<1x128xf32, #tpu.memory_space<vmem>>, vector<1x128xf32>
    %21 = vector.broadcast %20 : vector<1x128xf32> to vector<8x128xf32>
    %22 = arith.addf %19, %21 : vector<8x128xf32>
    %c0_16 = arith.constant 0 : index
    %c0_17 = arith.constant 0 : index
    %23 = vector.load %arg8[%c0_16, %c0_17] : memref<8x128xf32, #tpu.memory_space<vmem>>, vector<8x128xf32>
    tpu.vector_store %arg8[%c0_16, %c0_17], %22 {strides = array<i32>} : memref<8x128xf32, #tpu.memory_space<vmem>>, vector<8x128xf32>,
    return
  }
  func.func @transform_0(%arg0: i32) -> (i32, i32) {
    %c0_i32 = arith.constant 0 : i32
    %c0_i32_0 = arith.constant 0 : i32
    return %arg0, %c0_i32 : i32, i32
  }
  func.func @transform_1(%arg0: i32) -> (i32, i32) {
    %c0_i32 = arith.constant 0 : i32
    %c0_i32_0 = arith.constant 0 : i32
    %c0_i32_1 = arith.constant 0 : i32
    return %c0_i32, %c0_i32_0 : i32, i32
  }
  func.func @transform_2(%arg0: i32) -> (i32, i32) {
    %c0_i32 = arith.constant 0 : i32
    %c0_i32_0 = arith.constant 0 : i32
    %c0_i32_1 = arith.constant 0 : i32
    return %c0_i32, %c0_i32_0 : i32, i32
  }
  func.func @transform_3(%arg0: i32) -> (i32, i32) {
    %c0_i32 = arith.constant 0 : i32
    %c0_i32_0 = arith.constant 0 : i32
    %c0_i32_1 = arith.constant 0 : i32
    return %c0_i32, %c0_i32_0 : i32, i32
  }
  func.func @transform_4(%arg0: i32) -> (i32, i32) {
    %c0_i32 = arith.constant 0 : i32
    %c0_i32_0 = arith.constant 0 : i32
    %c0_i32_1 = arith.constant 0 : i32
    return %c0_i32, %c0_i32_0 : i32, i32
  }
  func.func @transform_5(%arg0: i32) -> (i32, i32) {
    %c0_i32 = arith.constant 0 : i32
    %c0_i32_0 = arith.constant 0 : i32
    %c0_i32_1 = arith.constant 0 : i32
    return %c0_i32, %c0_i32_0 : i32, i32
  }
  func.func @transform_6(%arg0: i32) -> (i32, i32) {
    %c0_i32 = arith.constant 0 : i32
    %c0_i32_0 = arith.constant 0 : i32
    %c0_i32_1 = arith.constant 0 : i32
    return %c0_i32, %c0_i32_0 : i32, i32
  }
  func.func @transform_7(%arg0: i32) -> (i32, i32) {
    %c0_i32 = arith.constant 0 : i32
    %c0_i32_0 = arith.constant 0 : i32
    return %arg0, %c0_i32 : i32, i32
  }
}

</mosaic_0001>

<llo_original>
// kernel: imi_forward.2
$region0: #{imi_forward.2}
  #allocation0 [shape = 'u32[]', space=smem, size = 0x4, offset = 0x4, fixed_abs, tag = 'smem constant byte address 0x4 - core index']
  #allocation1 [shape = 'u32[144,128]{1,0:T(1,128)}', space=vmem, size = 0x12000, scoped, tag = 'internal scratch']
  %s0 = inlined_call_operand.vmem [shape: f32[8,512], index: 0, kind: input, shape index: {}]
  %s1 = inlined_call_operand.vmem [shape: f32[1,512], index: 1, kind: input, shape index: {}]
  %s2 = inlined_call_operand.vmem [shape: f32[1,512], index: 2, kind: input, shape index: {}]
  %s3 = inlined_call_operand.vmem [shape: bf16[512,512], index: 3, kind: input, shape index: {}]
  %s4 = inlined_call_operand.vmem [shape: f32[1,512], index: 4, kind: input, shape index: {}]
  %s5 = inlined_call_operand.vmem [shape: f32[8,512], index: 5, kind: output, shape index: {0}]
  %s6 = inlined_call_operand.vmem [shape: f32[1,8,512], index: 6, kind: output, shape index: {1}]
  %7 = xla_tuple %s5, %s6
  %s8 = sld [smem:[#allocation0]]
  $region38: #{imi_forward.2} parent=0
    _
  %s10 = ssub.s32 1, %s8
  %s11 = scalar_select 0, %s10, %s8
  // Predicated region
  $region2: #{imi_forward.2} parent=0 // pred_check
    _
  $region3: #{imi_forward.2} parent=0 // pred_check_branch
    %13 = sbr.rel (0) target = $region5
  $region4: #{imi_forward.2} parent=0 // pred_region
    _
  $region5: #{imi_forward.2} parent=0 // pred_fallthru
    _
  // Predicated region
  $region6: #{imi_forward.2} parent=0 // pred_check
    _
  $region7: #{imi_forward.2} parent=0 // pred_check_branch
    %15 = sbr.rel (0) target = $region9
  $region8: #{imi_forward.2} parent=0 // pred_region
    _
  $region9: #{imi_forward.2} parent=0 // pred_fallthru
    _
  // Predicated region
  $region10: #{imi_forward.2} parent=0 // pred_check
    _
  $region11: #{imi_forward.2} parent=0 // pred_check_branch
    %17 = sbr.rel (0) target = $region13
  $region12: #{imi_forward.2} parent=0 // pred_region
    _
  $region13: #{imi_forward.2} parent=0 // pred_fallthru
    _
  // Predicated region
  $region14: #{imi_forward.2} parent=0 // pred_check
    _
  $region15: #{imi_forward.2} parent=0 // pred_check_branch
    %19 = sbr.rel (0) target = $region17
  $region16: #{imi_forward.2} parent=0 // pred_region
    _
  $region17: #{imi_forward.2} parent=0 // pred_fallthru
    _
  // Predicated region
  $region18: #{imi_forward.2} parent=0 // pred_check
    _
  $region19: #{imi_forward.2} parent=0 // pred_check_branch
    %21 = sbr.rel (0) target = $region21
  $region20: #{imi_forward.2} parent=0 // pred_region
    _
  $region21: #{imi_forward.2} parent=0 // pred_fallthru
    _
  %v22 = vld [vmem:[%s0] sm:$0xff]
  %v23 = vld [vmem:[%s0 + $0x8] sm:$0xff]
  %v24 = vld [vmem:[%s0 + $0x10] sm:$0xff]
  %v25 = vld [vmem:[%s0 + $0x18] sm:$0xff]
  %v26 = vld [vmem:[%s1] sm:$0xf]
  %v28 = vlaneseq
  %v29 = vshrl.u32 %v28, 7
  %v30 = vsub.s32 0, %v29
  %v31 = vrot.slane %v26, %v30
  %v32 = vlaneseq
  %v33 = vshrl.u32 %v32, 7
  %v34 = vsub.s32 1, %v33
  %v35 = vrot.slane %v26, %v34
  %v36 = vlaneseq
  %v37 = vshrl.u32 %v36, 7
  %v38 = vsub.s32 2, %v37
  %v39 = vrot.slane %v26, %v38
  %v40 = vlaneseq
  %v41 = vshrl.u32 %v40, 7
  %v42 = vsub.s32 3, %v41
  %v43 = vrot.slane %v26, %v42
  %v48 = vmul.f32 %v22, %v31
  %v49 = vmul.f32 %v23, %v35
  %v50 = vmul.f32 %v24, %v39
  %v51 = vmul.f32 %v25, %v43
  %v52 = vld [vmem:[%s2] sm:$0xf]
  %v54 = vlaneseq
  %v55 = vshrl.u32 %v54, 7
  %v56 = vsub.s32 0, %v55
  %v57 = vrot.slane %v52, %v56
  %v58 = vlaneseq
  %v59 = vshrl.u32 %v58, 7
  %v60 = vsub.s32 1, %v59
  %v61 = vrot.slane %v52, %v60
  %v62 = vlaneseq
  %v63 = vshrl.u32 %v62, 7
  %v64 = vsub.s32 2, %v63
  %v65 = vrot.slane %v52, %v64
  %v66 = vlaneseq
  %v67 = vshrl.u32 %v66, 7
  %v68 = vsub.s32 3, %v67
  %v69 = vrot.slane %v52, %v68
  %v74 = vadd.f32 %v48, %v57
  %v75 = vadd.f32 %v49, %v61
  %v76 = vadd.f32 %v50, %v65
  %v77 = vadd.f32 %v51, %v69
  %v78 = vpack.c.bf16 %v74, %v74
  %v79 = vpack.c.bf16 %v75, %v75
  %v80 = vpack.c.bf16 %v76, %v76
  %v81 = vpack.c.bf16 %v77, %v77
  %v82 = vld [vmem:[%s3] sm:$0xff]
  %v83 = vld [vmem:[%s3 + $0x8] sm:$0xff]
  %v84 = vld [vmem:[%s3 + $0x10] sm:$0xff]
  %v85 = vld [vmem:[%s3 + $0x18] sm:$0xff]
  %v86 = vld [vmem:[%s3 + $0x20] sm:$0xff]
  %v87 = vld [vmem:[%s3 + $0x28] sm:$0xff]
  %v88 = vld [vmem:[%s3 + $0x30] sm:$0xff]
  %v89 = vld [vmem:[%s3 + $0x38] sm:$0xff]
  %v90 = vld [vmem:[%s3 + $0x40] sm:$0xff]
  %v91 = vld [vmem:[%s3 + $0x48] sm:$0xff]
  %v92 = vld [vmem:[%s3 + $0x50] sm:$0xff]
  %v93 = vld [vmem:[%s3 + $0x58] sm:$0xff]
  %v94 = vld [vmem:[%s3 + $0x60] sm:$0xff]
  %v95 = vld [vmem:[%s3 + $0x68] sm:$0xff]
  %v96 = vld [vmem:[%s3 + $0x70] sm:$0xff]
  %v97 = vld [vmem:[%s3 + $0x78] sm:$0xff]
  %v98 = vld [vmem:[%s3 + $0x80] sm:$0xff]
  %v99 = vld [vmem:[%s3 + $0x88] sm:$0xff]
  %v100 = vld [vmem:[%s3 + $0x90] sm:$0xff]
  %v101 = vld [vmem:[%s3 + $0x98] sm:$0xff]
  %v102 = vld [vmem:[%s3 + $0xa0] sm:$0xff]
  %v103 = vld [vmem:[%s3 + $0xa8] sm:$0xff]
  %v104 = vld [vmem:[%s3 + $0xb0] sm:$0xff]
  %v105 = vld [vmem:[%s3 + $0xb8] sm:$0xff]
  %v106 = vld [vmem:[%s3 + $0xc0] sm:$0xff]
  %v107 = vld [vmem:[%s3 + $0xc8] sm:$0xff]
  %v108 = vld [vmem:[%s3 + $0xd0] sm:$0xff]
  %v109 = vld [vmem:[%s3 + $0xd8] sm:$0xff]
  %v110 = vld [vmem:[%s3 + $0xe0] sm:$0xff]
  %v111 = vld [vmem:[%s3 + $0xe8] sm:$0xff]
  %v112 = vld [vmem:[%s3 + $0xf0] sm:$0xff]
  %v113 = vld [vmem:[%s3 + $0xf8] sm:$0xff]
  %v114 = vld [vmem:[%s3 + $0x100] sm:$0xff]
  %v115 = vld [vmem:[%s3 + $0x108] sm:$0xff]
  %v116 = vld [vmem:[%s3 + $0x110] sm:$0xff]
  %v117 = vld [vmem:[%s3 + $0x118] sm:$0xff]
  %v118 = vld [vmem:[%s3 + $0x120] sm:$0xff]
  %v119 = vld [vmem:[%s3 + $0x128] sm:$0xff]
  %v120 = vld [vmem:[%s3 + $0x130] sm:$0xff]
  %v121 = vld [vmem:[%s3 + $0x138] sm:$0xff]
  %v122 = vld [vmem:[%s3 + $0x140] sm:$0xff]
  %v123 = vld [vmem:[%s3 + $0x148] sm:$0xff]
  %v124 = vld [vmem:[%s3 + $0x150] sm:$0xff]
  %v125 = vld [vmem:[%s3 + $0x158] sm:$0xff]
  %v126 = vld [vmem:[%s3 + $0x160] sm:$0xff]
  %v127 = vld [vmem:[%s3 + $0x168] sm:$0xff]
  %v128 = vld [vmem:[%s3 + $0x170] sm:$0xff]
  %v129 = vld [vmem:[%s3 + $0x178] sm:$0xff]
  %v130 = vld [vmem:[%s3 + $0x180] sm:$0xff]
  %v131 = vld [vmem:[%s3 + $0x188] sm:$0xff]
  %v132 = vld [vmem:[%s3 + $0x190] sm:$0xff]
  %v133 = vld [vmem:[%s3 + $0x198] sm:$0xff]
  %v134 = vld [vmem:[%s3 + $0x1a0] sm:$0xff]
  %v135 = vld [vmem:[%s3 + $0x1a8] sm:$0xff]
  %v136 = vld [vmem:[%s3 + $0x1b0] sm:$0xff]
  %v137 = vld [vmem:[%s3 + $0x1b8] sm:$0xff]
  %v138 = vld [vmem:[%s3 + $0x1c0] sm:$0xff]
  %v139 = vld [vmem:[%s3 + $0x1c8] sm:$0xff]
  %v140 = vld [vmem:[%s3 + $0x1d0] sm:$0xff]
  %v141 = vld [vmem:[%s3 + $0x1d8] sm:$0xff]
  %v142 = vld [vmem:[%s3 + $0x1e0] sm:$0xff]
  %v143 = vld [vmem:[%s3 + $0x1e8] sm:$0xff]
  %v144 = vld [vmem:[%s3 + $0x1f0] sm:$0xff]
  %v145 = vld [vmem:[%s3 + $0x1f8] sm:$0xff]
  %v146 = vld [vmem:[%s3 + $0x200] sm:$0xff]
  %v147 = vld [vmem:[%s3 + $0x208] sm:$0xff]
  %v148 = vld [vmem:[%s3 + $0x210] sm:$0xff]
  %v149 = vld [vmem:[%s3 + $0x218] sm:$0xff]
  %v150 = vld [vmem:[%s3 + $0x220] sm:$0xff]
  %v151 = vld [vmem:[%s3 + $0x228] sm:$0xff]
  %v152 = vld [vmem:[%s3 + $0x230] sm:$0xff]
  %v153 = vld [vmem:[%s3 + $0x238] sm:$0xff]
  %v154 = vld [vmem:[%s3 + $0x240] sm:$0xff]
  %v155 = vld [vmem:[%s3 + $0x248] sm:$0xff]
  %v156 = vld [vmem:[%s3 + $0x250] sm:$0xff]
  %v157 = vld [vmem:[%s3 + $0x258] sm:$0xff]
  %v158 = vld [vmem:[%s3 + $0x260] sm:$0xff]
  %v159 = vld [vmem:[%s3 + $0x268] sm:$0xff]
  %v160 = vld [vmem:[%s3 + $0x270] sm:$0xff]
  %v161 = vld [vmem:[%s3 + $0x278] sm:$0xff]
  %v162 = vld [vmem:[%s3 + $0x280] sm:$0xff]
  %v163 = vld [vmem:[%s3 + $0x288] sm:$0xff]
  %v164 = vld [vmem:[%s3 + $0x290] sm:$0xff]
  %v165 = vld [vmem:[%s3 + $0x298] sm:$0xff]
  %v166 = vld [vmem:[%s3 + $0x2a0] sm:$0xff]
  %v167 = vld [vmem:[%s3 + $0x2a8] sm:$0xff]
  %v168 = vld [vmem:[%s3 + $0x2b0] sm:$0xff]
  %v169 = vld [vmem:[%s3 + $0x2b8] sm:$0xff]
  %v170 = vld [vmem:[%s3 + $0x2c0] sm:$0xff]
  %v171 = vld [vmem:[%s3 + $0x2c8] sm:$0xff]
  %v172 = vld [vmem:[%s3 + $0x2d0] sm:$0xff]
  %v173 = vld [vmem:[%s3 + $0x2d8] sm:$0xff]
  %v174 = vld [vmem:[%s3 + $0x2e0] sm:$0xff]
  %v175 = vld [vmem:[%s3 + $0x2e8] sm:$0xff]
  %v176 = vld [vmem:[%s3 + $0x2f0] sm:$0xff]
  %v177 = vld [vmem:[%s3 + $0x2f8] sm:$0xff]
  %v178 = vld [vmem:[%s3 + $0x300] sm:$0xff]
  %v179 = vld [vmem:[%s3 + $0x308] sm:$0xff]
  %v180 = vld [vmem:[%s3 + $0x310] sm:$0xff]
  %v181 = vld [vmem:[%s3 + $0x318] sm:$0xff]
  %v182 = vld [vmem:[%s3 + $0x320] sm:$0xff]
  %v183 = vld [vmem:[%s3 + $0x328] sm:$0xff]
  %v184 = vld [vmem:[%s3 + $0x330] sm:$0xff]
  %v185 = vld [vmem:[%s3 + $0x338] sm:$0xff]
  %v186 = vld [vmem:[%s3 + $0x340] sm:$0xff]
  %v187 = vld [vmem:[%s3 + $0x348] sm:$0xff]
  %v188 = vld [vmem:[%s3 + $0x350] sm:$0xff]
  %v189 = vld [vmem:[%s3 + $0x358] sm:$0xff]
  %v190 = vld [vmem:[%s3 + $0x360] sm:$0xff]
  %v191 = vld [vmem:[%s3 + $0x368] sm:$0xff]
  %v192 = vld [vmem:[%s3 + $0x370] sm:$0xff]
  %v193 = vld [vmem:[%s3 + $0x378] sm:$0xff]
  %v194 = vld [vmem:[%s3 + $0x380] sm:$0xff]
  %v195 = vld [vmem:[%s3 + $0x388] sm:$0xff]
  %v196 = vld [vmem:[%s3 + $0x390] sm:$0xff]
  %v197 = vld [vmem:[%s3 + $0x398] sm:$0xff]
  %v198 = vld [vmem:[%s3 + $0x3a0] sm:$0xff]
  %v199 = vld [vmem:[%s3 + $0x3a8] sm:$0xff]
  %v200 = vld [vmem:[%s3 + $0x3b0] sm:$0xff]
  %v201 = vld [vmem:[%s3 + $0x3b8] sm:$0xff]
  %v202 = vld [vmem:[%s3 + $0x3c0] sm:$0xff]
  %v203 = vld [vmem:[%s3 + $0x3c8] sm:$0xff]
  %v204 = vld [vmem:[%s3 + $0x3d0] sm:$0xff]
  %v205 = vld [vmem:[%s3 + $0x3d8] sm:$0xff]
  %v206 = vld [vmem:[%s3 + $0x3e0] sm:$0xff]
  %v207 = vld [vmem:[%s3 + $0x3e8] sm:$0xff]
  %v208 = vld [vmem:[%s3 + $0x3f0] sm:$0xff]
  %v209 = vld [vmem:[%s3 + $0x3f8] sm:$0xff]
  %v210 = vld [vmem:[%s4] sm:$0xf]
  %v212 = vlaneseq
  %v213 = vshrl.u32 %v212, 7
  %v214 = vsub.s32 0, %v213
  %v215 = vrot.slane %v210, %v214
  %v216 = vlaneseq
  %v217 = vshrl.u32 %v216, 7
  %v218 = vsub.s32 1, %v217
  %v219 = vrot.slane %v210, %v218
  %v220 = vlaneseq
  %v221 = vshrl.u32 %v220, 7
  %v222 = vsub.s32 2, %v221
  %v223 = vrot.slane %v210, %v222
  %v224 = vlaneseq
  %v225 = vshrl.u32 %v224, 7
  %v226 = vsub.s32 3, %v225
  %v227 = vrot.slane %v210, %v226
  %v360 = vunpack.c.l.b16 %v82
  %v361 = vunpack.c.h.b16 %v82
  %v362 = vunpack.c.l.b16 %v83
  %v363 = vunpack.c.h.b16 %v83
  %v364 = vunpack.c.l.b16 %v84
  %v365 = vunpack.c.h.b16 %v84
  %v366 = vunpack.c.l.b16 %v85
  %v367 = vunpack.c.h.b16 %v85
  %v368 = vunpack.c.l.b16 %v86
  %v369 = vunpack.c.h.b16 %v86
  %v370 = vunpack.c.l.b16 %v87
  %v371 = vunpack.c.h.b16 %v87
  %v372 = vunpack.c.l.b16 %v88
  %v373 = vunpack.c.h.b16 %v88
  %v374 = vunpack.c.l.b16 %v89
  %v375 = vunpack.c.h.b16 %v89
  %v376 = vunpack.c.l.b16 %v90
  %v377 = vunpack.c.h.b16 %v90
  %v378 = vunpack.c.l.b16 %v91
  %v379 = vunpack.c.h.b16 %v91
  %v380 = vunpack.c.l.b16 %v92
  %v381 = vunpack.c.h.b16 %v92
  %v382 = vunpack.c.l.b16 %v93
  %v383 = vunpack.c.h.b16 %v93
  %v384 = vunpack.c.l.b16 %v94
  %v385 = vunpack.c.h.b16 %v94
  %v386 = vunpack.c.l.b16 %v95
  %v387 = vunpack.c.h.b16 %v95
  %v388 = vunpack.c.l.b16 %v96
  %v389 = vunpack.c.h.b16 %v96
  %v390 = vunpack.c.l.b16 %v97
  %v391 = vunpack.c.h.b16 %v97
  %v392 = vunpack.c.l.b16 %v98
  %v393 = vunpack.c.h.b16 %v98
  %v394 = vunpack.c.l.b16 %v99
  %v395 = vunpack.c.h.b16 %v99
  %v396 = vunpack.c.l.b16 %v100
  %v397 = vunpack.c.h.b16 %v100
  %v398 = vunpack.c.l.b16 %v101
  %v399 = vunpack.c.h.b16 %v101
  %v400 = vunpack.c.l.b16 %v102
  %v401 = vunpack.c.h.b16 %v102
  %v402 = vunpack.c.l.b16 %v103
  %v403 = vunpack.c.h.b16 %v103
  %v404 = vunpack.c.l.b16 %v104
  %v405 = vunpack.c.h.b16 %v104
  %v406 = vunpack.c.l.b16 %v105
  %v407 = vunpack.c.h.b16 %v105
  %v408 = vunpack.c.l.b16 %v106
  %v409 = vunpack.c.h.b16 %v106
  %v410 = vunpack.c.l.b16 %v107
  %v411 = vunpack.c.h.b16 %v107
  %v412 = vunpack.c.l.b16 %v108
  %v413 = vunpack.c.h.b16 %v108
  %v414 = vunpack.c.l.b16 %v109
  %v415 = vunpack.c.h.b16 %v109
  %v416 = vunpack.c.l.b16 %v110
  %v417 = vunpack.c.h.b16 %v110
  %v418 = vunpack.c.l.b16 %v111
  %v419 = vunpack.c.h.b16 %v111
  %v420 = vunpack.c.l.b16 %v112
  %v421 = vunpack.c.h.b16 %v112
  %v422 = vunpack.c.l.b16 %v113
  %v423 = vunpack.c.h.b16 %v113
  %v424 = vunpack.c.l.b16 %v114
  %v425 = vunpack.c.h.b16 %v114
  %v426 = vunpack.c.l.b16 %v115
  %v427 = vunpack.c.h.b16 %v115
  %v428 = vunpack.c.l.b16 %v116
  %v429 = vunpack.c.h.b16 %v116
  %v430 = vunpack.c.l.b16 %v117
  %v431 = vunpack.c.h.b16 %v117
  %v432 = vunpack.c.l.b16 %v118
  %v433 = vunpack.c.h.b16 %v118
  %v434 = vunpack.c.l.b16 %v119
  %v435 = vunpack.c.h.b16 %v119
  %v436 = vunpack.c.l.b16 %v120
  %v437 = vunpack.c.h.b16 %v120
  %v438 = vunpack.c.l.b16 %v121
  %v439 = vunpack.c.h.b16 %v121
  %v440 = vunpack.c.l.b16 %v122
  %v441 = vunpack.c.h.b16 %v122
  %v442 = vunpack.c.l.b16 %v123
  %v443 = vunpack.c.h.b16 %v123
  %v444 = vunpack.c.l.b16 %v124
  %v445 = vunpack.c.h.b16 %v124
  %v446 = vunpack.c.l.b16 %v125
  %v447 = vunpack.c.h.b16 %v125
  %v448 = vunpack.c.l.b16 %v126
  %v449 = vunpack.c.h.b16 %v126
  %v450 = vunpack.c.l.b16 %v127
  %v451 = vunpack.c.h.b16 %v127
  %v452 = vunpack.c.l.b16 %v128
  %v453 = vunpack.c.h.b16 %v128
  %v454 = vunpack.c.l.b16 %v129
  %v455 = vunpack.c.h.b16 %v129
  %v456 = vunpack.c.l.b16 %v130
  %v457 = vunpack.c.h.b16 %v130
  %v458 = vunpack.c.l.b16 %v131
  %v459 = vunpack.c.h.b16 %v131
  %v460 = vunpack.c.l.b16 %v132
  %v461 = vunpack.c.h.b16 %v132
  %v462 = vunpack.c.l.b16 %v133
  %v463 = vunpack.c.h.b16 %v133
  %v464 = vunpack.c.l.b16 %v134
  %v465 = vunpack.c.h.b16 %v134
  %v466 = vunpack.c.l.b16 %v135
  %v467 = vunpack.c.h.b16 %v135
  %v468 = vunpack.c.l.b16 %v136
  %v469 = vunpack.c.h.b16 %v136
  %v470 = vunpack.c.l.b16 %v137
  %v471 = vunpack.c.h.b16 %v137
  %v472 = vunpack.c.l.b16 %v138
  %v473 = vunpack.c.h.b16 %v138
  %v474 = vunpack.c.l.b16 %v139
  %v475 = vunpack.c.h.b16 %v139
  %v476 = vunpack.c.l.b16 %v140
  %v477 = vunpack.c.h.b16 %v140
  %v478 = vunpack.c.l.b16 %v141
  %v479 = vunpack.c.h.b16 %v141
  %v480 = vunpack.c.l.b16 %v142
  %v481 = vunpack.c.h.b16 %v142
  %v482 = vunpack.c.l.b16 %v143
  %v483 = vunpack.c.h.b16 %v143
  %v484 = vunpack.c.l.b16 %v144
  %v485 = vunpack.c.h.b16 %v144
  %v486 = vunpack.c.l.b16 %v145
  %v487 = vunpack.c.h.b16 %v145
  %v488 = vunpack.c.l.b16 %v146
  %v489 = vunpack.c.h.b16 %v146
  %v490 = vunpack.c.l.b16 %v147
  %v491 = vunpack.c.h.b16 %v147
  %v492 = vunpack.c.l.b16 %v148
  %v493 = vunpack.c.h.b16 %v148
  %v494 = vunpack.c.l.b16 %v149
  %v495 = vunpack.c.h.b16 %v149
  %v496 = vunpack.c.l.b16 %v150
  %v497 = vunpack.c.h.b16 %v150
  %v498 = vunpack.c.l.b16 %v151
  %v499 = vunpack.c.h.b16 %v151
  %v500 = vunpack.c.l.b16 %v152
  %v501 = vunpack.c.h.b16 %v152
  %v502 = vunpack.c.l.b16 %v153
  %v503 = vunpack.c.h.b16 %v153
  %v504 = vunpack.c.l.b16 %v154
  %v505 = vunpack.c.h.b16 %v154
  %v506 = vunpack.c.l.b16 %v155
  %v507 = vunpack.c.h.b16 %v155
  %v508 = vunpack.c.l.b16 %v156
  %v509 = vunpack.c.h.b16 %v156
  %v510 = vunpack.c.l.b16 %v157
  %v511 = vunpack.c.h.b16 %v157
  %v512 = vunpack.c.l.b16 %v158
  %v513 = vunpack.c.h.b16 %v158
  %v514 = vunpack.c.l.b16 %v159
  %v515 = vunpack.c.h.b16 %v159
  %v516 = vunpack.c.l.b16 %v160
  %v517 = vunpack.c.h.b16 %v160
  %v518 = vunpack.c.l.b16 %v161
  %v519 = vunpack.c.h.b16 %v161
  %v520 = vunpack.c.l.b16 %v162
  %v521 = vunpack.c.h.b16 %v162
  %v522 = vunpack.c.l.b16 %v163
  %v523 = vunpack.c.h.b16 %v163
  %v524 = vunpack.c.l.b16 %v164
  %v525 = vunpack.c.h.b16 %v164
  %v526 = vunpack.c.l.b16 %v165
  %v527 = vunpack.c.h.b16 %v165
  %v528 = vunpack.c.l.b16 %v166
  %v529 = vunpack.c.h.b16 %v166
  %v530 = vunpack.c.l.b16 %v167
  %v531 = vunpack.c.h.b16 %v167
  %v532 = vunpack.c.l.b16 %v168
  %v533 = vunpack.c.h.b16 %v168
  %v534 = vunpack.c.l.b16 %v169
  %v535 = vunpack.c.h.b16 %v169
  %v536 = vunpack.c.l.b16 %v170
  %v537 = vunpack.c.h.b16 %v170
  %v538 = vunpack.c.l.b16 %v171
  %v539 = vunpack.c.h.b16 %v171
  %v540 = vunpack.c.l.b16 %v172
  %v541 = vunpack.c.h.b16 %v172
  %v542 = vunpack.c.l.b16 %v173
  %v543 = vunpack.c.h.b16 %v173
  %v544 = vunpack.c.l.b16 %v174
  %v545 = vunpack.c.h.b16 %v174
  %v546 = vunpack.c.l.b16 %v175
  %v547 = vunpack.c.h.b16 %v175
  %v548 = vunpack.c.l.b16 %v176
  %v549 = vunpack.c.h.b16 %v176
  %v550 = vunpack.c.l.b16 %v177
  %v551 = vunpack.c.h.b16 %v177
  %v552 = vunpack.c.l.b16 %v178
  %v553 = vunpack.c.h.b16 %v178
  %v554 = vunpack.c.l.b16 %v179
  %v555 = vunpack.c.h.b16 %v179
  %v556 = vunpack.c.l.b16 %v180
  %v557 = vunpack.c.h.b16 %v180
  %v558 = vunpack.c.l.b16 %v181
  %v559 = vunpack.c.h.b16 %v181
  %v560 = vunpack.c.l.b16 %v182
  %v561 = vunpack.c.h.b16 %v182
  %v562 = vunpack.c.l.b16 %v183
  %v563 = vunpack.c.h.b16 %v183
  %v564 = vunpack.c.l.b16 %v184
  %v565 = vunpack.c.h.b16 %v184
  %v566 = vunpack.c.l.b16 %v185
  %v567 = vunpack.c.h.b16 %v185
  %v568 = vunpack.c.l.b16 %v186
  %v569 = vunpack.c.h.b16 %v186
  %v570 = vunpack.c.l.b16 %v187
  %v571 = vunpack.c.h.b16 %v187
  %v572 = vunpack.c.l.b16 %v188
  %v573 = vunpack.c.h.b16 %v188
  %v574 = vunpack.c.l.b16 %v189
  %v575 = vunpack.c.h.b16 %v189
  %v576 = vunpack.c.l.b16 %v190
  %v577 = vunpack.c.h.b16 %v190
  %v578 = vunpack.c.l.b16 %v191
  %v579 = vunpack.c.h.b16 %v191
  %v580 = vunpack.c.l.b16 %v192
  %v581 = vunpack.c.h.b16 %v192
  %v582 = vunpack.c.l.b16 %v193
  %v583 = vunpack.c.h.b16 %v193
  %v584 = vunpack.c.l.b16 %v194
  %v585 = vunpack.c.h.b16 %v194
  %v586 = vunpack.c.l.b16 %v195
  %v587 = vunpack.c.h.b16 %v195
  %v588 = vunpack.c.l.b16 %v196
  %v589 = vunpack.c.h.b16 %v196
  %v590 = vunpack.c.l.b16 %v197
  %v591 = vunpack.c.h.b16 %v197
  %v592 = vunpack.c.l.b16 %v198
  %v593 = vunpack.c.h.b16 %v198
  %v594 = vunpack.c.l.b16 %v199
  %v595 = vunpack.c.h.b16 %v199
  %v596 = vunpack.c.l.b16 %v200
  %v597 = vunpack.c.h.b16 %v200
  %v598 = vunpack.c.l.b16 %v201
  %v599 = vunpack.c.h.b16 %v201
  %v600 = vunpack.c.l.b16 %v202
  %v601 = vunpack.c.h.b16 %v202
  %v602 = vunpack.c.l.b16 %v203
  %v603 = vunpack.c.h.b16 %v203
  %v604 = vunpack.c.l.b16 %v204
  %v605 = vunpack.c.h.b16 %v204
  %v606 = vunpack.c.l.b16 %v205
  %v607 = vunpack.c.h.b16 %v205
  %v608 = vunpack.c.l.b16 %v206
  %v609 = vunpack.c.h.b16 %v206
  %v610 = vunpack.c.l.b16 %v207
  %v611 = vunpack.c.h.b16 %v207
  %v612 = vunpack.c.l.b16 %v208
  %v613 = vunpack.c.h.b16 %v208
  %v614 = vunpack.c.l.b16 %v209
  %v615 = vunpack.c.h.b16 %v209
  %v616 = vpack.c.b16 %v364, %v360
  %v617 = vpack.c.b16 %v365, %v361
  %v618 = vpack.c.b16 %v366, %v362
  %v619 = vpack.c.b16 %v367, %v363
  %v620 = vpack.c.b16 %v372, %v368
  %v621 = vpack.c.b16 %v373, %v369
  %v622 = vpack.c.b16 %v374, %v370
  %v623 = vpack.c.b16 %v375, %v371
  %v624 = vpack.c.b16 %v380, %v376
  %v625 = vpack.c.b16 %v381, %v377
  %v626 = vpack.c.b16 %v382, %v378
  %v627 = vpack.c.b16 %v383, %v379
  %v628 = vpack.c.b16 %v388, %v384
  %v629 = vpack.c.b16 %v389, %v385
  %v630 = vpack.c.b16 %v390, %v386
  %v631 = vpack.c.b16 %v391, %v387
  %v632 = vpack.c.b16 %v396, %v392
  %v633 = vpack.c.b16 %v397, %v393
  %v634 = vpack.c.b16 %v398, %v394
  %v635 = vpack.c.b16 %v399, %v395
  %v636 = vpack.c.b16 %v404, %v400
  %v637 = vpack.c.b16 %v405, %v401
  %v638 = vpack.c.b16 %v406, %v402
  %v639 = vpack.c.b16 %v407, %v403
  %v640 = vpack.c.b16 %v412, %v408
  %v641 = vpack.c.b16 %v413, %v409
  %v642 = vpack.c.b16 %v414, %v410
  %v643 = vpack.c.b16 %v415, %v411
  %v644 = vpack.c.b16 %v420, %v416
  %v645 = vpack.c.b16 %v421, %v417
  %v646 = vpack.c.b16 %v422, %v418
  %v647 = vpack.c.b16 %v423, %v419
  %v648 = vpack.c.b16 %v428, %v424
  %v649 = vpack.c.b16 %v429, %v425
  %v650 = vpack.c.b16 %v430, %v426
  %v651 = vpack.c.b16 %v431, %v427
  %v652 = vpack.c.b16 %v436, %v432
  %v653 = vpack.c.b16 %v437, %v433
  %v654 = vpack.c.b16 %v438, %v434
  %v655 = vpack.c.b16 %v439, %v435
  %v656 = vpack.c.b16 %v444, %v440
  %v657 = vpack.c.b16 %v445, %v441
  %v658 = vpack.c.b16 %v446, %v442
  %v659 = vpack.c.b16 %v447, %v443
  %v660 = vpack.c.b16 %v452, %v448
  %v661 = vpack.c.b16 %v453, %v449
  %v662 = vpack.c.b16 %v454, %v450
  %v663 = vpack.c.b16 %v455, %v451
  %v664 = vpack.c.b16 %v460, %v456
  %v665 = vpack.c.b16 %v461, %v457
  %v666 = vpack.c.b16 %v462, %v458
  %v667 = vpack.c.b16 %v463, %v459
  %v668 = vpack.c.b16 %v468, %v464
  %v669 = vpack.c.b16 %v469, %v465
  %v670 = vpack.c.b16 %v470, %v466
  %v671 = vpack.c.b16 %v471, %v467
  %v672 = vpack.c.b16 %v476, %v472
  %v673 = vpack.c.b16 %v477, %v473
  %v674 = vpack.c.b16 %v478, %v474
  %v675 = vpack.c.b16 %v479, %v475
  %v676 = vpack.c.b16 %v484, %v480
  %v677 = vpack.c.b16 %v485, %v481
  %v678 = vpack.c.b16 %v486, %v482
  %v679 = vpack.c.b16 %v487, %v483
  %v680 = vpack.c.b16 %v492, %v488
  %v681 = vpack.c.b16 %v493, %v489
  %v682 = vpack.c.b16 %v494, %v490
  %v683 = vpack.c.b16 %v495, %v491
  %v684 = vpack.c.b16 %v500, %v496
  %v685 = vpack.c.b16 %v501, %v497
  %v686 = vpack.c.b16 %v502, %v498
  %v687 = vpack.c.b16 %v503, %v499
  %v688 = vpack.c.b16 %v508, %v504
  %v689 = vpack.c.b16 %v509, %v505
  %v690 = vpack.c.b16 %v510, %v506
  %v691 = vpack.c.b16 %v511, %v507
  %v692 = vpack.c.b16 %v516, %v512
  %v693 = vpack.c.b16 %v517, %v513
  %v694 = vpack.c.b16 %v518, %v514
  %v695 = vpack.c.b16 %v519, %v515
  %v696 = vpack.c.b16 %v524, %v520
  %v697 = vpack.c.b16 %v525, %v521
  %v698 = vpack.c.b16 %v526, %v522
  %v699 = vpack.c.b16 %v527, %v523
  %v700 = vpack.c.b16 %v532, %v528
  %v701 = vpack.c.b16 %v533, %v529
  %v702 = vpack.c.b16 %v534, %v530
  %v703 = vpack.c.b16 %v535, %v531
  %v704 = vpack.c.b16 %v540, %v536
  %v705 = vpack.c.b16 %v541, %v537
  %v706 = vpack.c.b16 %v542, %v538
  %v707 = vpack.c.b16 %v543, %v539
  %v708 = vpack.c.b16 %v548, %v544
  %v709 = vpack.c.b16 %v549, %v545
  %v710 = vpack.c.b16 %v550, %v546
  %v711 = vpack.c.b16 %v551, %v547
  %v712 = vpack.c.b16 %v556, %v552
  %v713 = vpack.c.b16 %v557, %v553
  %v714 = vpack.c.b16 %v558, %v554
  %v715 = vpack.c.b16 %v559, %v555
  %v716 = vpack.c.b16 %v564, %v560
  %v717 = vpack.c.b16 %v565, %v561
  %v718 = vpack.c.b16 %v566, %v562
  %v719 = vpack.c.b16 %v567, %v563
  %v720 = vpack.c.b16 %v572, %v568
  %v721 = vpack.c.b16 %v573, %v569
  %v722 = vpack.c.b16 %v574, %v570
  %v723 = vpack.c.b16 %v575, %v571
  %v724 = vpack.c.b16 %v580, %v576
  %v725 = vpack.c.b16 %v581, %v577
  %v726 = vpack.c.b16 %v582, %v578
  %v727 = vpack.c.b16 %v583, %v579
  %v728 = vpack.c.b16 %v588, %v584
  %v729 = vpack.c.b16 %v589, %v585
  %v730 = vpack.c.b16 %v590, %v586
  %v731 = vpack.c.b16 %v591, %v587
  %v732 = vpack.c.b16 %v596, %v592
  %v733 = vpack.c.b16 %v597, %v593
  %v734 = vpack.c.b16 %v598, %v594
  %v735 = vpack.c.b16 %v599, %v595
  %v736 = vpack.c.b16 %v604, %v600
  %v737 = vpack.c.b16 %v605, %v601
  %v738 = vpack.c.b16 %v606, %v602
  %v739 = vpack.c.b16 %v607, %v603
  %v740 = vpack.c.b16 %v612, %v608
  %v741 = vpack.c.b16 %v613, %v609
  %v742 = vpack.c.b16 %v614, %v610
  %v743 = vpack.c.b16 %v615, %v611
  %872 = vmatprep.subr.bf16.mxu0 %v617
  %873 = vmatpush1.bf16.msra.mxu0 %v616
  %874 = vmatprep.subr.bf16.mxu0 %v621
  %875 = vmatpush1.bf16.msra.mxu0 %v620
  %876 = vmatprep.subr.bf16.mxu0 %v625
  %877 = vmatpush1.bf16.msra.mxu0 %v624
  %878 = vmatprep.subr.bf16.mxu0 %v629
  %879 = vmatpush1.bf16.msra.mxu0 %v628
  %880 = vmatprep.subr.bf16.mxu0 %v633
  %881 = vmatpush1.bf16.msra.mxu0 %v632
  %882 = vmatprep.subr.bf16.mxu0 %v637
  %883 = vmatpush1.bf16.msra.mxu0 %v636
  %884 = vmatprep.subr.bf16.mxu0 %v641
  %885 = vmatpush1.bf16.msra.mxu0 %v640
  %886 = vmatprep.subr.bf16.mxu0 %v645
  %887 = vmatpush1.bf16.msra.mxu0 %v644
  %888 = vmatprep.subr.bf16.mxu0 %v649
  %889 = vmatpush1.bf16.msra.mxu0 %v648
  %890 = vmatprep.subr.bf16.mxu0 %v653
  %891 = vmatpush1.bf16.msra.mxu0 %v652
  %892 = vmatprep.subr.bf16.mxu0 %v657
  %893 = vmatpush1.bf16.msra.mxu0 %v656
  %894 = vmatprep.subr.bf16.mxu0 %v661
  %895 = vmatpush1.bf16.msra.mxu0 %v660
  %896 = vmatprep.subr.bf16.mxu0 %v665
  %897 = vmatpush1.bf16.msra.mxu0 %v664
  %898 = vmatprep.subr.bf16.mxu0 %v669
  %899 = vmatpush1.bf16.msra.mxu0 %v668
  %900 = vmatprep.subr.bf16.mxu0 %v673
  %901 = vmatpush1.bf16.msra.mxu0 %v672
  %902 = vmatprep.subr.bf16.mxu0 %v677
  %903 = vmatpush1.bf16.msra.mxu0 %v676
  %904 = vmatprep.mubr.bf16.mxu0 %v79
  %905 = vmatmul.mubr.bf16.gmra.mrb[0].mxu0 %v78
  %v906 = vpop.f32.mrb[0].mxu0
  %v907 = vadd.f32 %v215, %v906
  %v908 = vpop.f32.mrb[0].mxu0
  %v909 = vadd.f32 %v219, %v908
  %v910 = vpop.f32.mrb[0].mxu0
  %v911 = vpop.f32.mrb[0].mxu0
  %912 = vdwg.mxu0
  %913 = vmatprep.subr.bf16.mxu0 %v681
  %914 = vmatpush1.bf16.msra.mxu0 %v680
  %915 = vmatprep.subr.bf16.mxu0 %v685
  %916 = vmatpush1.bf16.msra.mxu0 %v684
  %917 = vmatprep.subr.bf16.mxu0 %v689
  %918 = vmatpush1.bf16.msra.mxu0 %v688
  %919 = vmatprep.subr.bf16.mxu0 %v693
  %920 = vmatpush1.bf16.msra.mxu0 %v692
  %921 = vmatprep.subr.bf16.mxu0 %v697
  %922 = vmatpush1.bf16.msra.mxu0 %v696
  %923 = vmatprep.subr.bf16.mxu0 %v701
  %924 = vmatpush1.bf16.msra.mxu0 %v700
  %925 = vmatprep.subr.bf16.mxu0 %v705
  %926 = vmatpush1.bf16.msra.mxu0 %v704
  %927 = vmatprep.subr.bf16.mxu0 %v709
  %928 = vmatpush1.bf16.msra.mxu0 %v708
  %929 = vmatprep.subr.bf16.mxu0 %v713
  %930 = vmatpush1.bf16.msra.mxu0 %v712
  %931 = vmatprep.subr.bf16.mxu0 %v717
  %932 = vmatpush1.bf16.msra.mxu0 %v716
  %933 = vmatprep.subr.bf16.mxu0 %v721
  %934 = vmatpush1.bf16.msra.mxu0 %v720
  %935 = vmatprep.subr.bf16.mxu0 %v725
  %936 = vmatpush1.bf16.msra.mxu0 %v724
  %937 = vmatprep.subr.bf16.mxu0 %v729
  %938 = vmatpush1.bf16.msra.mxu0 %v728
  %939 = vmatprep.subr.bf16.mxu0 %v733
  %940 = vmatpush1.bf16.msra.mxu0 %v732
  %941 = vmatprep.subr.bf16.mxu0 %v737
  %942 = vmatpush1.bf16.msra.mxu0 %v736
  %943 = vmatprep.subr.bf16.mxu0 %v741
  %944 = vmatpush1.bf16.msra.mxu0 %v740
  %945 = vmatprep.mubr.bf16.mxu0 %v81
  %946 = vmatmul.mubr.bf16.gmra.mrb[0].mxu0 %v80
  %v947 = vpop.f32.mrb[0].mxu0
  %v948 = vadd.f32 %v907, %v947
  %v949 = vpop.f32.mrb[0].mxu0
  %v950 = vadd.f32 %v909, %v949
  %v951 = vpop.f32.mrb[0].mxu0
  %v952 = vpop.f32.mrb[0].mxu0
  %953 = vdwg.mxu0
  %954 = vmatprep.subr.bf16.mxu0 %v619
  %955 = vmatpush1.bf16.msra.mxu0 %v618
  %956 = vmatprep.subr.bf16.mxu0 %v623
  %957 = vmatpush1.bf16.msra.mxu0 %v622
  %958 = vmatprep.subr.bf16.mxu0 %v627
  %959 = vmatpush1.bf16.msra.mxu0 %v626
  %960 = vmatprep.subr.bf16.mxu0 %v631
  %961 = vmatpush1.bf16.msra.mxu0 %v630
  %962 = vmatprep.subr.bf16.mxu0 %v635
  %963 = vmatpush1.bf16.msra.mxu0 %v634
  %964 = vmatprep.subr.bf16.mxu0 %v639
  %965 = vmatpush1.bf16.msra.mxu0 %v638
  %966 = vmatprep.subr.bf16.mxu0 %v643
  %967 = vmatpush1.bf16.msra.mxu0 %v642
  %968 = vmatprep.subr.bf16.mxu0 %v647
  %969 = vmatpush1.bf16.msra.mxu0 %v646
  %970 = vmatprep.subr.bf16.mxu0 %v651
  %971 = vmatpush1.bf16.msra.mxu0 %v650
  %972 = vmatprep.subr.bf16.mxu0 %v655
  %973 = vmatpush1.bf16.msra.mxu0 %v654
  %974 = vmatprep.subr.bf16.mxu0 %v659
  %975 = vmatpush1.bf16.msra.mxu0 %v658
  %976 = vmatprep.subr.bf16.mxu0 %v663
  %977 = vmatpush1.bf16.msra.mxu0 %v662
  %978 = vmatprep.subr.bf16.mxu0 %v667
  %979 = vmatpush1.bf16.msra.mxu0 %v666
  %980 = vmatprep.subr.bf16.mxu0 %v671
  %981 = vmatpush1.bf16.msra.mxu0 %v670
  %982 = vmatprep.subr.bf16.mxu0 %v675
  %983 = vmatpush1.bf16.msra.mxu0 %v674
  %984 = vmatprep.subr.bf16.mxu0 %v679
  %985 = vmatpush1.bf16.msra.mxu0 %v678
  %986 = vmatprep.mubr.bf16.mxu0 %v79
  %987 = vmatmul.mubr.bf16.gmra.mrb[0].mxu0 %v78
  %v988 = vpop.f32.mrb[0].mxu0
  %v989 = vadd.f32 %v223, %v988
  %v990 = vpop.f32.mrb[0].mxu0
  %v991 = vadd.f32 %v227, %v990
  %v992 = vpop.f32.mrb[0].mxu0
  %v993 = vpop.f32.mrb[0].mxu0
  %994 = vdwg.mxu0
  %995 = vmatprep.subr.bf16.mxu0 %v683
  %996 = vmatpush1.bf16.msra.mxu0 %v682
  %997 = vmatprep.subr.bf16.mxu0 %v687
  %998 = vmatpush1.bf16.msra.mxu0 %v686
  %999 = vmatprep.subr.bf16.mxu0 %v691
  %1000 = vmatpush1.bf16.msra.mxu0 %v690
  %1001 = vmatprep.subr.bf16.mxu0 %v695
  %1002 = vmatpush1.bf16.msra.mxu0 %v694
  %1003 = vmatprep.subr.bf16.mxu0 %v699
  %1004 = vmatpush1.bf16.msra.mxu0 %v698
  %1005 = vmatprep.subr.bf16.mxu0 %v703
  %1006 = vmatpush1.bf16.msra.mxu0 %v702
  %1007 = vmatprep.subr.bf16.mxu0 %v707
  %1008 = vmatpush1.bf16.msra.mxu0 %v706
  %1009 = vmatprep.subr.bf16.mxu0 %v711
  %1010 = vmatpush1.bf16.msra.mxu0 %v710
  %1011 = vmatprep.subr.bf16.mxu0 %v715
  %1012 = vmatpush1.bf16.msra.mxu0 %v714
  %1013 = vmatprep.subr.bf16.mxu0 %v719
  %1014 = vmatpush1.bf16.msra.mxu0 %v718
  %1015 = vmatprep.subr.bf16.mxu0 %v723
  %1016 = vmatpush1.bf16.msra.mxu0 %v722
  %1017 = vmatprep.subr.bf16.mxu0 %v727
  %1018 = vmatpush1.bf16.msra.mxu0 %v726
  %1019 = vmatprep.subr.bf16.mxu0 %v731
  %1020 = vmatpush1.bf16.msra.mxu0 %v730
  %1021 = vmatprep.subr.bf16.mxu0 %v735
  %1022 = vmatpush1.bf16.msra.mxu0 %v734
  %1023 = vmatprep.subr.bf16.mxu0 %v739
  %1024 = vmatpush1.bf16.msra.mxu0 %v738
  %1025 = vmatprep.subr.bf16.mxu0 %v743
  %1026 = vmatpush1.bf16.msra.mxu0 %v742
  %1027 = vmatprep.mubr.bf16.mxu0 %v81
  %1028 = vmatmul.mubr.bf16.gmra.mrb[0].mxu0 %v80
  %v1029 = vpop.f32.mrb[0].mxu0
  %v1030 = vadd.f32 %v989, %v1029
  %v1031 = vpop.f32.mrb[0].mxu0
  %v1032 = vadd.f32 %v991, %v1031
  %v1033 = vpop.f32.mrb[0].mxu0
  %v1034 = vpop.f32.mrb[0].mxu0
  %1035 = vdwg.mxu0
  %1036 = vst [vmem:[%s5] sm:$0xff] %v948
  %1037 = vst [vmem:[%s5 + $0x8] sm:$0xff] %v950
  %1038 = vst [vmem:[%s5 + $0x10] sm:$0xff] %v1030
  %1039 = vst [vmem:[%s5 + $0x18] sm:$0xff] %v1032
  %v1040 = vrot.slane %v948, 4
  %v1041 = vadd.f32 %v948, %v1040
  %v1042 = vrot.slane %v1041, 2
  %v1043 = vadd.f32 %v1041, %v1042
  %v1044 = vrot.slane %v1043, 1
  %v1045 = vadd.f32 %v1043, %v1044
  %v1046 = vrot.slane %v950, 4
  %v1047 = vadd.f32 %v950, %v1046
  %v1048 = vrot.slane %v1047, 2
  %v1049 = vadd.f32 %v1047, %v1048
  %v1050 = vrot.slane %v1049, 1
  %v1051 = vadd.f32 %v1049, %v1050
  %v1052 = vrot.slane %v1030, 4
  %v1053 = vadd.f32 %v1030, %v1052
  %v1054 = vrot.slane %v1053, 2
  %v1055 = vadd.f32 %v1053, %v1054
  %v1056 = vrot.slane %v1055, 1
  %v1057 = vadd.f32 %v1055, %v1056
  %v1058 = vrot.slane %v1032, 4
  %v1059 = vadd.f32 %v1032, %v1058
  %v1060 = vrot.slane %v1059, 2
  %v1061 = vadd.f32 %v1059, %v1060
  %v1062 = vrot.slane %v1061, 1
  %v1063 = vadd.f32 %v1061, %v1062
  %v1068 = vcombine.low %v1045, %v1051
  %v1069 = vcombine.low %v1057, %v1063
  %v1071 = vunpack.c.l.s4 1966171168
  %v1072 = vunpack.c.0.s8 %v1071
  %v1073 = vlaneseq
  %v1074 = vshrl.u32 %v1073, 7
  %v1075 = vsub.s32 %v1072, %v1074
  %v1076 = vrot.slane %v1068, %v1075
  %v1078 = vunpack.c.l.s4 1966171168
  %v1079 = vunpack.c.0.s8 %v1078
  %v1080 = vlaneseq
  %v1081 = vshrl.u32 %v1080, 7
  %v1082 = vsub.s32 %v1079, %v1081
  %v1083 = vrot.slane %v1069, %v1082
  %v1084 = vcombine.low %v1076, %v1083
  %v1086 = vunpack.c.l.s4 1966171168
  %v1087 = vunpack.c.0.s8 %v1086
  %v1088 = vlaneseq
  %v1089 = vshrl.u32 %v1088, 7
  %v1090 = vsub.s32 %v1087, %v1089
  %v1091 = vrot.slane %v1084, %v1090
  %v1093 = vlaneseq
  %vm1094 = vcmp.ge.s32.totalorder %v1093, 0
  %vm1095 = vcmp.lt.s32.totalorder %v1093, 512
  %vm1096 = vmand %vm1094, %vm1095
  %1097 = vst.msk [vmem:[%s6] ss:$8 sm:$0xf] %vm1096, %v1091
  %1098 = vst.msk [vmem:[%s6] ss:$8 sm:$0x0] %vm1096, %v1091
  %v1099 = vmul.f32 %v948, %v948
  %v1100 = vmul.f32 %v950, %v950
  %v1101 = vmul.f32 %v1030, %v1030
  %v1102 = vmul.f32 %v1032, %v1032
  %v1103 = vrot.slane %v1099, 4
  %v1104 = vadd.f32 %v1099, %v1103
  %v1105 = vrot.slane %v1104, 2
  %v1106 = vadd.f32 %v1104, %v1105
  %v1107 = vrot.slane %v1106, 1
  %v1108 = vadd.f32 %v1106, %v1107
  %v1109 = vrot.slane %v1100, 4
  %v1110 = vadd.f32 %v1100, %v1109
  %v1111 = vrot.slane %v1110, 2
  %v1112 = vadd.f32 %v1110, %v1111
  %v1113 = vrot.slane %v1112, 1
  %v1114 = vadd.f32 %v1112, %v1113
  %v1115 = vrot.slane %v1101, 4
  %v1116 = vadd.f32 %v1101, %v1115
  %v1117 = vrot.slane %v1116, 2
  %v1118 = vadd.f32 %v1116, %v1117
  %v1119 = vrot.slane %v1118, 1
  %v1120 = vadd.f32 %v1118, %v1119
  %v1121 = vrot.slane %v1102, 4
  %v1122 = vadd.f32 %v1102, %v1121
  %v1123 = vrot.slane %v1122, 2
  %v1124 = vadd.f32 %v1122, %v1123
  %v1125 = vrot.slane %v1124, 1
  %v1126 = vadd.f32 %v1124, %v1125
  %v1131 = vcombine.low %v1108, %v1114
  %v1132 = vcombine.low %v1120, %v1126
  %v1134 = vunpack.c.l.s4 1966171168
  %v1135 = vunpack.c.0.s8 %v1134
  %v1136 = vlaneseq
  %v1137 = vshrl.u32 %v1136, 7
  %v1138 = vsub.s32 %v1135, %v1137
  %v1139 = vrot.slane %v1131, %v1138
  %v1141 = vunpack.c.l.s4 1966171168
  %v1142 = vunpack.c.0.s8 %v1141
  %v1143 = vlaneseq
  %v1144 = vshrl.u32 %v1143, 7
  %v1145 = vsub.s32 %v1142, %v1144
  %v1146 = vrot.slane %v1132, %v1145
  %v1147 = vcombine.low %v1139, %v1146
  %v1149 = vunpack.c.l.s4 1966171168
  %v1150 = vunpack.c.0.s8 %v1149
  %v1151 = vlaneseq
  %v1152 = vshrl.u32 %v1151, 7
  %v1153 = vsub.s32 %v1150, %v1152
  %v1154 = vrot.slane %v1147, %v1153
  %s1156 = scalar_lea.vmem %s6, 1
  %1157 = vst.msk [vmem:[%s1156] ss:$8 sm:$0xf] %vm1096, %v1154
  %1158 = vst.msk [vmem:[%s1156] ss:$8 sm:$0x0] %vm1096, %v1154
  // Predicated region
  $region22: #{imi_forward.2} parent=0 // pred_check
    _
  $region23: #{imi_forward.2} parent=0 // pred_check_branch
    %1160 = sbr.rel (0) target = $region25
  $region24: #{imi_forward.2} parent=0 // pred_region
    _
  $region25: #{imi_forward.2} parent=0 // pred_fallthru
    _
  // Predicated region
  $region26: #{imi_forward.2} parent=0 // pred_check
    _
  $region27: #{imi_forward.2} parent=0 // pred_check_branch
    %1162 = sbr.rel (0) target = $region29
  $region28: #{imi_forward.2} parent=0 // pred_region
    _
  $region29: #{imi_forward.2} parent=0 // pred_fallthru
    _
  // Predicated region
  $region30: #{imi_forward.2} parent=0 // pred_check
    _
  $region31: #{imi_forward.2} parent=0 // pred_check_branch
    %1164 = sbr.rel (0) target = $region33
  $region32: #{imi_forward.2} parent=0 // pred_region
    _
  $region33: #{imi_forward.2} parent=0 // pred_fallthru
    _
  // Predicated region
  $region34: #{imi_forward.2} parent=0 // pred_check
    _
  $region35: #{imi_forward.2} parent=0 // pred_check_branch
    %1166 = sbr.rel (0) target = $region37
  $region36: #{imi_forward.2} parent=0 // pred_region
    _
  $region37: #{imi_forward.2} parent=0 // pred_fallthru
    _

// kernel: imi_forward.3
$region0: #{imi_forward.3}
  #allocation0 [shape = 'u32[]', space=smem, size = 0x4, offset = 0x4, fixed_abs, tag = 'smem constant byte address 0x4 - core index']
  #allocation1 [shape = 'u32[144,128]{1,0:T(1,128)}', space=vmem, size = 0x12000, scoped, tag = 'internal scratch']
  %s0 = inlined_call_operand.vmem [shape: f32[8,512], index: 0, kind: input, shape index: {}]
  %s1 = inlined_call_operand.vmem [shape: f32[1,512], index: 1, kind: input, shape index: {}]
  %s2 = inlined_call_operand.vmem [shape: f32[1,512], index: 2, kind: input, shape index: {}]
  %s3 = inlined_call_operand.vmem [shape: bf16[512,128], index: 3, kind: input, shape index: {}]
  %s4 = inlined_call_operand.vmem [shape: f32[1,128], index: 4, kind: input, shape index: {}]
  %s5 = inlined_call_operand.vmem [shape: bf16[128,128], index: 5, kind: input, shape index: {}]
  %s6 = inlined_call_operand.vmem [shape: f32[1,128], index: 6, kind: input, shape index: {}]
  %s7 = inlined_call_operand.hbm [shape: f32[8,128], index: 7, kind: output, shape index: {}]
  %s8 = sld [smem:[#allocation0]]
  $region38: #{imi_forward.3} parent=0
    _
  %s10 = ssub.s32 1, %s8
  %s11 = scalar_select 0, %s10, %s8
  $region1: #{imi_forward.3} parent=0
    #allocation2 [shape = 'u8[4096]{0}', space=vmem, size = 0x1000, scoped, tag = 'output window, operand 0, single buffered']
    #allocation3 [shape = 's32[1]{0}', space=sflag, size = 0x4, scoped, tag = 'scoped memory for imi_forward.3']
    %12 = vsyncpa [#allocation3], 0
    // Predicated region
    $region2: #{imi_forward.3} parent=1 // pred_check
      _
    $region3: #{imi_forward.3} parent=1 // pred_check_branch
      %14 = sbr.rel (0) target = $region5
    $region4: #{imi_forward.3} parent=1 // pred_region
      _
    $region5: #{imi_forward.3} parent=1 // pred_fallthru
      _
    // Predicated region
    $region6: #{imi_forward.3} parent=1 // pred_check
      _
    $region7: #{imi_forward.3} parent=1 // pred_check_branch
      %16 = sbr.rel (0) target = $region9
    $region8: #{imi_forward.3} parent=1 // pred_region
      _
    $region9: #{imi_forward.3} parent=1 // pred_fallthru
      _
    // Predicated region
    $region10: #{imi_forward.3} parent=1 // pred_check
      _
    $region11: #{imi_forward.3} parent=1 // pred_check_branch
      %18 = sbr.rel (0) target = $region13
    $region12: #{imi_forward.3} parent=1 // pred_region
      _
    $region13: #{imi_forward.3} parent=1 // pred_fallthru
      _
    // Predicated region
    $region14: #{imi_forward.3} parent=1 // pred_check
      _
    $region15: #{imi_forward.3} parent=1 // pred_check_branch
      %20 = sbr.rel (0) target = $region17
    $region16: #{imi_forward.3} parent=1 // pred_region
      _
    $region17: #{imi_forward.3} parent=1 // pred_fallthru
      _
    // Predicated region
    $region18: #{imi_forward.3} parent=1 // pred_check
      _
    $region19: #{imi_forward.3} parent=1 // pred_check_branch
      %22 = sbr.rel (0) target = $region21
    $region20: #{imi_forward.3} parent=1 // pred_region
      _
    $region21: #{imi_forward.3} parent=1 // pred_fallthru
      _
    // Predicated region
    $region22: #{imi_forward.3} parent=1 // pred_check
      _
    $region23: #{imi_forward.3} parent=1 // pred_check_branch
      %24 = sbr.rel (0) target = $region25
    $region24: #{imi_forward.3} parent=1 // pred_region
      _
    $region25: #{imi_forward.3} parent=1 // pred_fallthru
      _
    // Predicated region
    $region26: #{imi_forward.3} parent=1 // pred_check
      _
    $region27: #{imi_forward.3} parent=1 // pred_check_branch
      %26 = sbr.rel (0) target = $region29
    $region28: #{imi_forward.3} parent=1 // pred_region
      _
    $region29: #{imi_forward.3} parent=1 // pred_fallthru
      _
    %v28 = vld [vmem:[%s0] sm:$0xff]
    %v29 = vld [vmem:[%s0 + $0x8] sm:$0xff]
    %v30 = vld [vmem:[%s0 + $0x10] sm:$0xff]
    %v31 = vld [vmem:[%s0 + $0x18] sm:$0xff]
    %v32 = vld [vmem:[%s1] sm:$0xf]
    %v34 = vlaneseq
    %v35 = vshrl.u32 %v34, 7
    %v36 = vsub.s32 0, %v35
    %v37 = vrot.slane %v32, %v36
    %v38 = vlaneseq
    %v39 = vshrl.u32 %v38, 7
    %v40 = vsub.s32 1, %v39
    %v41 = vrot.slane %v32, %v40
    %v42 = vlaneseq
    %v43 = vshrl.u32 %v42, 7
    %v44 = vsub.s32 2, %v43
    %v45 = vrot.slane %v32, %v44
    %v46 = vlaneseq
    %v47 = vshrl.u32 %v46, 7
    %v48 = vsub.s32 3, %v47
    %v49 = vrot.slane %v32, %v48
    %v54 = vmul.f32 %v28, %v37
    %v55 = vmul.f32 %v29, %v41
    %v56 = vmul.f32 %v30, %v45
    %v57 = vmul.f32 %v31, %v49
    %v58 = vld [vmem:[%s2] sm:$0xf]
    %v60 = vlaneseq
    %v61 = vshrl.u32 %v60, 7
    %v62 = vsub.s32 0, %v61
    %v63 = vrot.slane %v58, %v62
    %v64 = vlaneseq
    %v65 = vshrl.u32 %v64, 7
    %v66 = vsub.s32 1, %v65
    %v67 = vrot.slane %v58, %v66
    %v68 = vlaneseq
    %v69 = vshrl.u32 %v68, 7
    %v70 = vsub.s32 2, %v69
    %v71 = vrot.slane %v58, %v70
    %v72 = vlaneseq
    %v73 = vshrl.u32 %v72, 7
    %v74 = vsub.s32 3, %v73
    %v75 = vrot.slane %v58, %v74
    %v80 = vadd.f32 %v54, %v63
    %v81 = vadd.f32 %v55, %v67
    %v82 = vadd.f32 %v56, %v71
    %v83 = vadd.f32 %v57, %v75
    %v84 = vmax.f32 %v80, 0.0
    %v85 = vmax.f32 %v81, 0.0
    %v86 = vmax.f32 %v82, 0.0
    %v87 = vmax.f32 %v83, 0.0
    %v88 = vpack.c.bf16 %v84, %v84
    %v89 = vpack.c.bf16 %v85, %v85
    %v90 = vpack.c.bf16 %v86, %v86
    %v91 = vpack.c.bf16 %v87, %v87
    %v92 = vld [vmem:[%s3] sm:$0xf]
    %v93 = vld [vmem:[%s3 + $0x4] sm:$0xf]
    %v94 = vld [vmem:[%s3 + $0x8] sm:$0xf]
    %v95 = vld [vmem:[%s3 + $0xc] sm:$0xf]
    %v96 = vld [vmem:[%s3 + $0x10] sm:$0xf]
    %v97 = vld [vmem:[%s3 + $0x14] sm:$0xf]
    %v98 = vld [vmem:[%s3 + $0x18] sm:$0xf]
    %v99 = vld [vmem:[%s3 + $0x1c] sm:$0xf]
    %v100 = vld [vmem:[%s3 + $0x20] sm:$0xf]
    %v101 = vld [vmem:[%s3 + $0x24] sm:$0xf]
    %v102 = vld [vmem:[%s3 + $0x28] sm:$0xf]
    %v103 = vld [vmem:[%s3 + $0x2c] sm:$0xf]
    %v104 = vld [vmem:[%s3 + $0x30] sm:$0xf]
    %v105 = vld [vmem:[%s3 + $0x34] sm:$0xf]
    %v106 = vld [vmem:[%s3 + $0x38] sm:$0xf]
    %v107 = vld [vmem:[%s3 + $0x3c] sm:$0xf]
    %v108 = vld [vmem:[%s3 + $0x40] sm:$0xf]
    %v109 = vld [vmem:[%s3 + $0x44] sm:$0xf]
    %v110 = vld [vmem:[%s3 + $0x48] sm:$0xf]
    %v111 = vld [vmem:[%s3 + $0x4c] sm:$0xf]
    %v112 = vld [vmem:[%s3 + $0x50] sm:$0xf]
    %v113 = vld [vmem:[%s3 + $0x54] sm:$0xf]
    %v114 = vld [vmem:[%s3 + $0x58] sm:$0xf]
    %v115 = vld [vmem:[%s3 + $0x5c] sm:$0xf]
    %v116 = vld [vmem:[%s3 + $0x60] sm:$0xf]
    %v117 = vld [vmem:[%s3 + $0x64] sm:$0xf]
    %v118 = vld [vmem:[%s3 + $0x68] sm:$0xf]
    %v119 = vld [vmem:[%s3 + $0x6c] sm:$0xf]
    %v120 = vld [vmem:[%s3 + $0x70] sm:$0xf]
    %v121 = vld [vmem:[%s3 + $0x74] sm:$0xf]
    %v122 = vld [vmem:[%s3 + $0x78] sm:$0xf]
    %v123 = vld [vmem:[%s3 + $0x7c] sm:$0xf]
    %v124 = vld [vmem:[%s3 + $0x80] sm:$0xf]
    %v125 = vld [vmem:[%s3 + $0x84] sm:$0xf]
    %v126 = vld [vmem:[%s3 + $0x88] sm:$0xf]
    %v127 = vld [vmem:[%s3 + $0x8c] sm:$0xf]
    %v128 = vld [vmem:[%s3 + $0x90] sm:$0xf]
    %v129 = vld [vmem:[%s3 + $0x94] sm:$0xf]
    %v130 = vld [vmem:[%s3 + $0x98] sm:$0xf]
    %v131 = vld [vmem:[%s3 + $0x9c] sm:$0xf]
    %v132 = vld [vmem:[%s3 + $0xa0] sm:$0xf]
    %v133 = vld [vmem:[%s3 + $0xa4] sm:$0xf]
    %v134 = vld [vmem:[%s3 + $0xa8] sm:$0xf]
    %v135 = vld [vmem:[%s3 + $0xac] sm:$0xf]
    %v136 = vld [vmem:[%s3 + $0xb0] sm:$0xf]
    %v137 = vld [vmem:[%s3 + $0xb4] sm:$0xf]
    %v138 = vld [vmem:[%s3 + $0xb8] sm:$0xf]
    %v139 = vld [vmem:[%s3 + $0xbc] sm:$0xf]
    %v140 = vld [vmem:[%s3 + $0xc0] sm:$0xf]
    %v141 = vld [vmem:[%s3 + $0xc4] sm:$0xf]
    %v142 = vld [vmem:[%s3 + $0xc8] sm:$0xf]
    %v143 = vld [vmem:[%s3 + $0xcc] sm:$0xf]
    %v144 = vld [vmem:[%s3 + $0xd0] sm:$0xf]
    %v145 = vld [vmem:[%s3 + $0xd4] sm:$0xf]
    %v146 = vld [vmem:[%s3 + $0xd8] sm:$0xf]
    %v147 = vld [vmem:[%s3 + $0xdc] sm:$0xf]
    %v148 = vld [vmem:[%s3 + $0xe0] sm:$0xf]
    %v149 = vld [vmem:[%s3 + $0xe4] sm:$0xf]
    %v150 = vld [vmem:[%s3 + $0xe8] sm:$0xf]
    %v151 = vld [vmem:[%s3 + $0xec] sm:$0xf]
    %v152 = vld [vmem:[%s3 + $0xf0] sm:$0xf]
    %v153 = vld [vmem:[%s3 + $0xf4] sm:$0xf]
    %v154 = vld [vmem:[%s3 + $0xf8] sm:$0xf]
    %v155 = vld [vmem:[%s3 + $0xfc] sm:$0xf]
    %v156 = vld [vmem:[%s4] sm:$0x1]
    %v158 = vlaneseq
    %v159 = vshrl.u32 %v158, 7
    %v160 = vsub.s32 0, %v159
    %v161 = vrot.slane %v156, %v160
    %v227 = vunpack.c.l.b16 %v92
    %v228 = vunpack.c.l.b16 %v93
    %v229 = vunpack.c.l.b16 %v94
    %v230 = vunpack.c.l.b16 %v95
    %v231 = vunpack.c.l.b16 %v96
    %v232 = vunpack.c.l.b16 %v97
    %v233 = vunpack.c.l.b16 %v98
    %v234 = vunpack.c.l.b16 %v99
    %v235 = vunpack.c.l.b16 %v100
    %v236 = vunpack.c.l.b16 %v101
    %v237 = vunpack.c.l.b16 %v102
    %v238 = vunpack.c.l.b16 %v103
    %v239 = vunpack.c.l.b16 %v104
    %v240 = vunpack.c.l.b16 %v105
    %v241 = vunpack.c.l.b16 %v106
    %v242 = vunpack.c.l.b16 %v107
    %v243 = vunpack.c.l.b16 %v108
    %v244 = vunpack.c.l.b16 %v109
    %v245 = vunpack.c.l.b16 %v110
    %v246 = vunpack.c.l.b16 %v111
    %v247 = vunpack.c.l.b16 %v112
    %v248 = vunpack.c.l.b16 %v113
    %v249 = vunpack.c.l.b16 %v114
    %v250 = vunpack.c.l.b16 %v115
    %v251 = vunpack.c.l.b16 %v116
    %v252 = vunpack.c.l.b16 %v117
    %v253 = vunpack.c.l.b16 %v118
    %v254 = vunpack.c.l.b16 %v119
    %v255 = vunpack.c.l.b16 %v120
    %v256 = vunpack.c.l.b16 %v121
    %v257 = vunpack.c.l.b16 %v122
    %v258 = vunpack.c.l.b16 %v123
    %v259 = vunpack.c.l.b16 %v124
    %v260 = vunpack.c.l.b16 %v125
    %v261 = vunpack.c.l.b16 %v126
    %v262 = vunpack.c.l.b16 %v127
    %v263 = vunpack.c.l.b16 %v128
    %v264 = vunpack.c.l.b16 %v129
    %v265 = vunpack.c.l.b16 %v130
    %v266 = vunpack.c.l.b16 %v131
    %v267 = vunpack.c.l.b16 %v132
    %v268 = vunpack.c.l.b16 %v133
    %v269 = vunpack.c.l.b16 %v134
    %v270 = vunpack.c.l.b16 %v135
    %v271 = vunpack.c.l.b16 %v136
    %v272 = vunpack.c.l.b16 %v137
    %v273 = vunpack.c.l.b16 %v138
    %v274 = vunpack.c.l.b16 %v139
    %v275 = vunpack.c.l.b16 %v140
    %v276 = vunpack.c.l.b16 %v141
    %v277 = vunpack.c.l.b16 %v142
    %v278 = vunpack.c.l.b16 %v143
    %v279 = vunpack.c.l.b16 %v144
    %v280 = vunpack.c.l.b16 %v145
    %v281 = vunpack.c.l.b16 %v146
    %v282 = vunpack.c.l.b16 %v147
    %v283 = vunpack.c.l.b16 %v148
    %v284 = vunpack.c.l.b16 %v149
    %v285 = vunpack.c.l.b16 %v150
    %v286 = vunpack.c.l.b16 %v151
    %v287 = vunpack.c.l.b16 %v152
    %v288 = vunpack.c.l.b16 %v153
    %v289 = vunpack.c.l.b16 %v154
    %v290 = vunpack.c.l.b16 %v155
    %v291 = vpack.c.b16 %v228, %v227
    %v292 = vpack.c.b16 %v230, %v229
    %v293 = vpack.c.b16 %v232, %v231
    %v294 = vpack.c.b16 %v234, %v233
    %v295 = vpack.c.b16 %v236, %v235
    %v296 = vpack.c.b16 %v238, %v237
    %v297 = vpack.c.b16 %v240, %v239
    %v298 = vpack.c.b16 %v242, %v241
    %v299 = vpack.c.b16 %v244, %v243
    %v300 = vpack.c.b16 %v246, %v245
    %v301 = vpack.c.b16 %v248, %v247
    %v302 = vpack.c.b16 %v250, %v249
    %v303 = vpack.c.b16 %v252, %v251
    %v304 = vpack.c.b16 %v254, %v253
    %v305 = vpack.c.b16 %v256, %v255
    %v306 = vpack.c.b16 %v258, %v257
    %v307 = vpack.c.b16 %v260, %v259
    %v308 = vpack.c.b16 %v262, %v261
    %v309 = vpack.c.b16 %v264, %v263
    %v310 = vpack.c.b16 %v266, %v265
    %v311 = vpack.c.b16 %v268, %v267
    %v312 = vpack.c.b16 %v270, %v269
    %v313 = vpack.c.b16 %v272, %v271
    %v314 = vpack.c.b16 %v274, %v273
    %v315 = vpack.c.b16 %v276, %v275
    %v316 = vpack.c.b16 %v278, %v277
    %v317 = vpack.c.b16 %v280, %v279
    %v318 = vpack.c.b16 %v282, %v281
    %v319 = vpack.c.b16 %v284, %v283
    %v320 = vpack.c.b16 %v286, %v285
    %v321 = vpack.c.b16 %v288, %v287
    %v322 = vpack.c.b16 %v290, %v289
    %355 = vmatprep.subr.bf16.mxu0 0
    %356 = vmatpush1.bf16.msra.mxu0 %v291
    %357 = vmatprep.subr.bf16.mxu0 0
    %358 = vmatpush1.bf16.msra.mxu0 %v292
    %359 = vmatprep.subr.bf16.mxu0 0
    %360 = vmatpush1.bf16.msra.mxu0 %v293
    %361 = vmatprep.subr.bf16.mxu0 0
    %362 = vmatpush1.bf16.msra.mxu0 %v294
    %363 = vmatprep.subr.bf16.mxu0 0
    %364 = vmatpush1.bf16.msra.mxu0 %v295
    %365 = vmatprep.subr.bf16.mxu0 0
    %366 = vmatpush1.bf16.msra.mxu0 %v296
    %367 = vmatprep.subr.bf16.mxu0 0
    %368 = vmatpush1.bf16.msra.mxu0 %v297
    %369 = vmatprep.subr.bf16.mxu0 0
    %370 = vmatpush1.bf16.msra.mxu0 %v298
    %371 = vmatprep.subr.bf16.mxu0 0
    %372 = vmatpush1.bf16.msra.mxu0 %v299
    %373 = vmatprep.subr.bf16.mxu0 0
    %374 = vmatpush1.bf16.msra.mxu0 %v300
    %375 = vmatprep.subr.bf16.mxu0 0
    %376 = vmatpush1.bf16.msra.mxu0 %v301
    %377 = vmatprep.subr.bf16.mxu0 0
    %378 = vmatpush1.bf16.msra.mxu0 %v302
    %379 = vmatprep.subr.bf16.mxu0 0
    %380 = vmatpush1.bf16.msra.mxu0 %v303
    %381 = vmatprep.subr.bf16.mxu0 0
    %382 = vmatpush1.bf16.msra.mxu0 %v304
    %383 = vmatprep.subr.bf16.mxu0 0
    %384 = vmatpush1.bf16.msra.mxu0 %v305
    %385 = vmatprep.subr.bf16.mxu0 0
    %386 = vmatpush1.bf16.msra.mxu0 %v306
    %387 = vmatprep.mubr.bf16.mxu0 %v89
    %388 = vmatmul.mubr.bf16.gmra.mrb[0].mxu0 %v88
    %v389 = vpop.f32.mrb[0].mxu0
    %v390 = vadd.f32 %v161, %v389
    %v391 = vpop.f32.mrb[0].mxu0
    %v392 = vpop.f32.mrb[0].mxu0
    %v393 = vpop.f32.mrb[0].mxu0
    %394 = vdwg.mxu0
    %395 = vmatprep.subr.bf16.mxu0 0
    %396 = vmatpush1.bf16.msra.mxu0 %v307
    %397 = vmatprep.subr.bf16.mxu0 0
    %398 = vmatpush1.bf16.msra.mxu0 %v308
    %399 = vmatprep.subr.bf16.mxu0 0
    %400 = vmatpush1.bf16.msra.mxu0 %v309
    %401 = vmatprep.subr.bf16.mxu0 0
    %402 = vmatpush1.bf16.msra.mxu0 %v310
    %403 = vmatprep.subr.bf16.mxu0 0
    %404 = vmatpush1.bf16.msra.mxu0 %v311
    %405 = vmatprep.subr.bf16.mxu0 0
    %406 = vmatpush1.bf16.msra.mxu0 %v312
    %407 = vmatprep.subr.bf16.mxu0 0
    %408 = vmatpush1.bf16.msra.mxu0 %v313
    %409 = vmatprep.subr.bf16.mxu0 0
    %410 = vmatpush1.bf16.msra.mxu0 %v314
    %411 = vmatprep.subr.bf16.mxu0 0
    %412 = vmatpush1.bf16.msra.mxu0 %v315
    %413 = vmatprep.subr.bf16.mxu0 0
    %414 = vmatpush1.bf16.msra.mxu0 %v316
    %415 = vmatprep.subr.bf16.mxu0 0
    %416 = vmatpush1.bf16.msra.mxu0 %v317
    %417 = vmatprep.subr.bf16.mxu0 0
    %418 = vmatpush1.bf16.msra.mxu0 %v318
    %419 = vmatprep.subr.bf16.mxu0 0
    %420 = vmatpush1.bf16.msra.mxu0 %v319
    %421 = vmatprep.subr.bf16.mxu0 0
    %422 = vmatpush1.bf16.msra.mxu0 %v320
    %423 = vmatprep.subr.bf16.mxu0 0
    %424 = vmatpush1.bf16.msra.mxu0 %v321
    %425 = vmatprep.subr.bf16.mxu0 0
    %426 = vmatpush1.bf16.msra.mxu0 %v322
    %427 = vmatprep.mubr.bf16.mxu0 %v91
    %428 = vmatmul.mubr.bf16.gmra.mrb[0].mxu0 %v90
    %v429 = vpop.f32.mrb[0].mxu0
    %v430 = vadd.f32 %v390, %v429
    %v431 = vpop.f32.mrb[0].mxu0
    %v432 = vpop.f32.mrb[0].mxu0
    %v433 = vpop.f32.mrb[0].mxu0
    %434 = vdwg.mxu0
    %v435 = vmax.f32 %v430, 0.0
    %v436 = vpack.c.bf16 %v435, %v435
    %v437 = vld [vmem:[%s5] sm:$0xf]
    %v438 = vld [vmem:[%s5 + $0x4] sm:$0xf]
    %v439 = vld [vmem:[%s5 + $0x8] sm:$0xf]
    %v440 = vld [vmem:[%s5 + $0xc] sm:$0xf]
    %v441 = vld [vmem:[%s5 + $0x10] sm:$0xf]
    %v442 = vld [vmem:[%s5 + $0x14] sm:$0xf]
    %v443 = vld [vmem:[%s5 + $0x18] sm:$0xf]
    %v444 = vld [vmem:[%s5 + $0x1c] sm:$0xf]
    %v445 = vld [vmem:[%s5 + $0x20] sm:$0xf]
    %v446 = vld [vmem:[%s5 + $0x24] sm:$0xf]
    %v447 = vld [vmem:[%s5 + $0x28] sm:$0xf]
    %v448 = vld [vmem:[%s5 + $0x2c] sm:$0xf]
    %v449 = vld [vmem:[%s5 + $0x30] sm:$0xf]
    %v450 = vld [vmem:[%s5 + $0x34] sm:$0xf]
    %v451 = vld [vmem:[%s5 + $0x38] sm:$0xf]
    %v452 = vld [vmem:[%s5 + $0x3c] sm:$0xf]
    %v453 = vld [vmem:[%s6] sm:$0x1]
    %v455 = vlaneseq
    %v456 = vshrl.u32 %v455, 7
    %v457 = vsub.s32 0, %v456
    %v458 = vrot.slane %v453, %v457
    %v476 = vunpack.c.l.b16 %v437
    %v477 = vunpack.c.l.b16 %v438
    %v478 = vunpack.c.l.b16 %v439
    %v479 = vunpack.c.l.b16 %v440
    %v480 = vunpack.c.l.b16 %v441
    %v481 = vunpack.c.l.b16 %v442
    %v482 = vunpack.c.l.b16 %v443
    %v483 = vunpack.c.l.b16 %v444
    %v484 = vunpack.c.l.b16 %v445
    %v485 = vunpack.c.l.b16 %v446
    %v486 = vunpack.c.l.b16 %v447
    %v487 = vunpack.c.l.b16 %v448
    %v488 = vunpack.c.l.b16 %v449
    %v489 = vunpack.c.l.b16 %v450
    %v490 = vunpack.c.l.b16 %v451
    %v491 = vunpack.c.l.b16 %v452
    %v492 = vpack.c.b16 %v477, %v476
    %v493 = vpack.c.b16 %v479, %v478
    %v494 = vpack.c.b16 %v481, %v480
    %v495 = vpack.c.b16 %v483, %v482
    %v496 = vpack.c.b16 %v485, %v484
    %v497 = vpack.c.b16 %v487, %v486
    %v498 = vpack.c.b16 %v489, %v488
    %v499 = vpack.c.b16 %v491, %v490
    %508 = vmatprep.subr.bf16.mxu0 0
    %509 = vmatpush1.bf16.msra.mxu0 %v492
    %510 = vmatprep.subr.bf16.mxu0 0
    %511 = vmatpush1.bf16.msra.mxu0 %v493
    %512 = vmatprep.subr.bf16.mxu0 0
    %513 = vmatpush1.bf16.msra.mxu0 %v494
    %514 = vmatprep.subr.bf16.mxu0 0
    %515 = vmatpush1.bf16.msra.mxu0 %v495
    %516 = vmatprep.subr.bf16.mxu0 0
    %517 = vmatpush1.bf16.msra.mxu0 %v496
    %518 = vmatprep.subr.bf16.mxu0 0
    %519 = vmatpush1.bf16.msra.mxu0 %v497
    %520 = vmatprep.subr.bf16.mxu0 0
    %521 = vmatpush1.bf16.msra.mxu0 %v498
    %522 = vmatprep.subr.bf16.mxu0 0
    %523 = vmatpush1.bf16.msra.mxu0 %v499
    %524 = vmatprep.subr.bf16.mxu0 0
    %525 = vmatpush1.bf16.msra.mxu0 0
    %526 = vmatprep.subr.bf16.mxu0 0
    %527 = vmatpush1.bf16.msra.mxu0 0
    %528 = vmatprep.subr.bf16.mxu0 0
    %529 = vmatpush1.bf16.msra.mxu0 0
    %530 = vmatprep.subr.bf16.mxu0 0
    %531 = vmatpush1.bf16.msra.mxu0 0
    %532 = vmatprep.subr.bf16.mxu0 0
    %533 = vmatpush1.bf16.msra.mxu0 0
    %534 = vmatprep.subr.bf16.mxu0 0
    %535 = vmatpush1.bf16.msra.mxu0 0
    %536 = vmatprep.subr.bf16.mxu0 0
    %537 = vmatpush1.bf16.msra.mxu0 0
    %538 = vmatprep.subr.bf16.mxu0 0
    %539 = vmatpush1.bf16.msra.mxu0 0
    %540 = vmatprep.mubr.bf16.mxu0 0
    %541 = vmatmul.mubr.bf16.gmra.mrb[0].mxu0 %v436
    %v542 = vpop.f32.mrb[0].mxu0
    %v543 = vadd.f32 %v458, %v542
    %v544 = vpop.f32.mrb[0].mxu0
    %v545 = vpop.f32.mrb[0].mxu0
    %v546 = vpop.f32.mrb[0].mxu0
    %547 = vdwg.mxu0
    %548 = vst [vmem:[#allocation2] sm:$0xff] %v543
    // Predicated region
    $region30: #{imi_forward.3} parent=1 // pred_check
      _
    $region31: #{imi_forward.3} parent=1 // pred_check_branch
      %550 = sbr.rel (0) target = $region33
    $region32: #{imi_forward.3} parent=1 // pred_region
      %s552 = ssub.s32 128, 128
      %553 = vsyncadd [#allocation3], %s552
      %s555 = sshll.u32 [#allocation2], 4
      %s556 = int_to_ptr.vmem [resolvable:$true] %s555
      %558 = dma.vmem_to_hbm [thread:$0]  %s556, 128, %s7, [#allocation3]
    $region33: #{imi_forward.3} parent=1 // pred_fallthru
      _
    // Predicated region
    $region34: #{imi_forward.3} parent=1 // pred_check
      _
    $region35: #{imi_forward.3} parent=1 // pred_check_branch
      %560 = sbr.rel (0) target = $region37
    $region36: #{imi_forward.3} parent=1 // pred_region
      %561 = dma.done [#allocation3], 128
    $region37: #{imi_forward.3} parent=1 // pred_fallthru
      _
    %562 = vsyncpa [#allocation3], 1

</llo_original>
